<compile_context>
chip_gen: v5e
topology: v5e:2x2
jax: 0.10.0
libtpu: 0.0.40
codegen_flags: <defaults>
</compile_context>

<pallas_src>
import functools
import math

import jax
import jax.numpy as jnp
from jax.experimental import pallas as pl
from jax.experimental.pallas import tpu as pltpu


# ---------------------------------------------------------------------------
# Fused kernel: [matmul -> BN(batch stats) -> ReLU] x num_layers, one grid step
# computes one channel-tile of the final layer (earlier layers recomputed, tiny).
# ---------------------------------------------------------------------------
def _fused_block_kernel(*refs, layer_meta, m_rows, eps):
    a_ref = refs[0]
    o_ref = refs[-1]
    x = a_ref[...]                                   # (M0, K0) bf16
    num_layers = len(layer_meta)
    for li, meta in enumerate(layer_meta):
        w_ref = refs[1 + 3 * li]
        g_ref = refs[2 + 3 * li]
        b_ref = refs[3 + 3 * li]

        # Transposed conv (k=s=2, p=0) as a lane-major matmul (bf16 in, f32 acc).
        y = jnp.dot(x, w_ref[...], preferred_element_type=jnp.float32)   # (M0, nc)
        nc = y.shape[1]
        c_blk = meta["c_block"]                      # channels per lane-block
        inv_n = 1.0 / float(m_rows * meta["g_out"])  # per-channel element count (global)

        # Single-pass stats: row-sums of y and y*y, then roll tree-fold over the
        # kernel-position groups (columns ordered (group, channel), group stride = c_blk,
        # power-of-two group count) -> every lane holds its channel's totals.
        s = jnp.sum(y, axis=0, keepdims=True)        # (1, nc)
        ss = jnp.sum(y * y, axis=0, keepdims=True)   # (1, nc)
        shift = nc // 2
        while shift >= c_blk:
            s = s + pltpu.roll(s, shift, axis=1)
            ss = ss + pltpu.roll(ss, shift, axis=1)
            shift //= 2

        mean = s * inv_n
        var = ss * inv_n - mean * mean               # biased variance (PyTorch train-mode)
        scale = g_ref[...] * jax.lax.rsqrt(var + eps)
        bias = b_ref[...] - mean * scale

        # Single-FMA BN + ReLU epilogue.
        x = jnp.maximum(y * scale + bias, 0.0)
        if li + 1 < num_layers:
            x = x.astype(jnp.bfloat16)               # bf16 operand for the next matmul

    o_ref[...] = x.astype(o_ref.dtype)


def fused_deconv_block(a_bf16, fused_layers, n_tiles, eps=1e-5):
    """a_bf16: (M0, Cin) bf16 pixels-as-rows.  Returns (M0, 4^T * C_last) f32."""
    m_rows, _ = a_bf16.shape
    in_specs = [pl.BlockSpec(a_bf16.shape, lambda t: (0, 0))]
    inputs = [a_bf16]
    layer_meta = []
    for p in fused_layers:
        w, g, b = p["w"], p["g"], p["b"]
        nc_total = w.shape[1]
        if p["is_last"] and n_tiles > 1:
            nc_blk = nc_total // n_tiles
            in_specs += [pl.BlockSpec((w.shape[0], nc_blk), lambda t: (0, t)),
                         pl.BlockSpec((1, nc_blk), lambda t: (0, t)),
                         pl.BlockSpec((1, nc_blk), lambda t: (0, t))]
            c_block = p["cout"] // n_tiles
        else:
            in_specs += [pl.BlockSpec(w.shape, lambda t: (0, 0)),
                         pl.BlockSpec((1, nc_total), lambda t: (0, 0)),
                         pl.BlockSpec((1, nc_total), lambda t: (0, 0))]
            c_block = p["cout"]
        inputs += [w, g, b]
        layer_meta.append(dict(c_block=c_block, g_out=p["g_out"]))

    nc_out_total = fused_layers[-1]["w"].shape[1]
    nc_out_blk = nc_out_total // n_tiles
    assert nc_out_blk % 128 == 0, "keep output tiles lane-dense (multiple of 128 lanes)"
    # Single-block-per-tile design: assert the working set is trivially VMEM-resident.
    assert m_rows * nc_out_blk * 4 * 4 < 12 * 1024 * 1024, (
        "scale-up needs the row-tiled two-pass variant (see TODO)")

    kernel = functools.partial(_fused_block_kernel, layer_meta=layer_meta,
                               m_rows=m_rows, eps=eps)
    return pl.pallas_call(
        kernel,
        out_shape=jax.ShapeDtypeStruct((m_rows, nc_out_total), jnp.float32),
        grid_spec=pltpu.PrefetchScalarGridSpec(
            num_scalar_prefetch=0,
            grid=(n_tiles,),                 # channel-tiles of the final layer
            in_specs=in_specs,
            out_specs=pl.BlockSpec((m_rows, nc_out_blk), lambda t: (0, t)),
        ),
        compiler_params=pltpu.CompilerParams(
            dimension_semantics=("parallel",),   # independent tiles: 2 TCs on v7x,
        ),                                       # pipelined writeback on v5e/v6e
    )(*inputs)


# ---------------------------------------------------------------------------
# Parameters: raw per-layer weights + precomputed fused (block-diagonal, bf16) layouts
# ---------------------------------------------------------------------------
def init_params(upscale_factor, key, n_lane_tiles=2):
    times = int(math.log2(upscale_factor))
    layers = []
    for i in range(times):
        out_channels = 32 if i != times - 1 else 128
        in_channels = 128 if i == 0 else 32
        key, wk = jax.random.split(key)
        fan = in_channels * 2 * 2
        # PyTorch ConvTranspose2d weight layout: (in_channels, out_channels, kH, kW)
        w = jax.random.normal(wk, (in_channels, out_channels, 2, 2), jnp.float32)
        w = w * (1.0 / jnp.sqrt(fan))
        gamma = jnp.ones((out_channels,), jnp.float32)   # BatchNorm2d default weight
        beta = jnp.zeros((out_channels,), jnp.float32)   # BatchNorm2d default bias
        layers.append(dict(w=w, gamma=gamma, beta=beta, cin=in_channels, cout=out_channels))

    # Choose the lane-tiling of the final layer (channel split; tile >= 128 lanes).
    c_last = layers[-1]["cout"]
    g_last = 4 ** times
    n_tiles = max(1, n_lane_tiles)
    while n_tiles > 1 and (c_last % n_tiles != 0
                           or (g_last * (c_last // n_tiles)) % 128 != 0):
        n_tiles -= 1

    fused = []
    for i, L in enumerate(layers):
        cin, cout = L["cin"], L["cout"]
        g_in = 4 ** i
        g_out = 4 * g_in
        is_last = (i == times - 1)
        # Matmul RHS for one pixel: columns ordered (kh, kw, cout) == (group, channel).
        base = jnp.transpose(L["w"], (0, 2, 3, 1)).reshape(cin, 4 * cout)
        # Block-diagonal expansion over the groups accumulated so far: activations stay in
        # the lane-major (M0, groups*channels) layout across layers, no in-kernel reshape.
        wbig = jnp.kron(jnp.eye(g_in, dtype=jnp.float32), base)   # (g_in*cin, g_out*cout)
        gt = jnp.tile(L["gamma"], g_out).reshape(1, g_out * cout)
        bt = jnp.tile(L["beta"], g_out).reshape(1, g_out * cout)
        if is_last and n_tiles > 1:
            # Reorder columns (group, channel) -> (tile, group, channel_local) so each
            # lane-tile owns complete channels across all groups (self-contained BN stats).
            c_tile = cout // n_tiles

            def retile(x):
                r = x.shape[0]
                return (x.reshape(r, g_out, n_tiles, c_tile)
                        .transpose(0, 2, 1, 3).reshape(r, g_out * cout))

            wbig, gt, bt = retile(wbig), retile(gt), retile(bt)
        fused.append(dict(w=wbig.astype(jnp.bfloat16), g=gt, b=bt,
                          cout=cout, g_out=g_out, is_last=is_last))

    return dict(layers=layers, fused=fused, times=times, n_tiles=n_tiles)


# ---------------------------------------------------------------------------
# Forward: one fused Pallas call, then a single XLA un-interleave to NCHW
# ---------------------------------------------------------------------------
def deconv_block_forward(x_nchw, params):
    N, C, H, W = x_nchw.shape
    T, n_tiles = params["times"], params["n_tiles"]
    a = jnp.transpose(x_nchw, (0, 2, 3, 1)).reshape(N * H * W, C).astype(jnp.bfloat16)
    y = fused_deconv_block(a, params["fused"], n_tiles)       # (M0, 4^T * C_last) f32
    c_last = params["layers"][-1]["cout"]
    c_tile = c_last // n_tiles
    # Rows: (n, h0, w0).  Columns: (tile, kh1, kw1, ..., khT, kwT, c_local).
    y = y.reshape((N, H, W, n_tiles) + (2, 2) * T + (c_tile,))
    perm = ((0, 3, 4 + 2 * T, 1)
            + tuple(4 + 2 * i for i in range(T))
            + (2,)
            + tuple(5 + 2 * i for i in range(T)))
    y = jnp.transpose(y, perm)
    return y.reshape(N, c_last, H * (2 ** T), W * (2 ** T))


# ---------------------------------------------------------------------------
# Pure-JAX reference (per-layer explicit interleave).  matmul_dtype=bf16 matches the
# kernel's MXU operand precision so the comparison isolates structural correctness;
# vs. a pure-f32 reference the expected deviation is plain bf16 rounding (~1e-2 level).
# ---------------------------------------------------------------------------
def reference_forward(x_nchw, params, eps=1e-5, matmul_dtype=jnp.bfloat16):
    x = jnp.transpose(x_nchw, (0, 2, 3, 1))
    for L in params["layers"]:
        w, gamma, beta = L["w"], L["gamma"], L["beta"]
        N, H, W, _ = x.shape
        Cout = w.shape[1]
        y = jnp.einsum("nijc,cokl->nikjlo",
                       x.astype(matmul_dtype), w.astype(matmul_dtype),
                       preferred_element_type=jnp.float32).reshape(N, 2 * H, 2 * W, Cout)
        mean = y.mean(axis=(0, 1, 2))
        var = y.var(axis=(0, 1, 2))
        y = (y - mean) * jax.lax.rsqrt(var + eps) * gamma + beta
        x = jnp.maximum(y, 0.0)
    return jnp.transpose(x, (0, 3, 1, 2))


if __name__ == "__main__":
    upscale_factor = 4            # times = 2 deconv stages: 128->32 then 32->128
    N, Cin, H, W = 2, 128, 8, 8   # Cin=128 is fixed by the module's first layer

    key = jax.random.PRNGKey(0)
    kx, kp = jax.random.split(key)
    x = jax.random.normal(kx, (N, Cin, H, W), jnp.float32)
    params = init_params(upscale_factor, kp)

    fwd = jax.jit(lambda xx: deconv_block_forward(xx, params))
    out = jax.block_until_ready(fwd(x))

    assert out.shape == (N, 128, H * upscale_factor, W * upscale_factor), out.shape
    ref = reference_forward(x, params)
    max_err = float(jnp.max(jnp.abs(out - ref)))
    assert jnp.allclose(out, ref, rtol=2e-3, atol=2e-3), max_err
    print("KERNEL_OK")
</pallas_src>

<mosaic_0001>
module attributes {stable_mosaic.version = 11 : i64} {
  func.func @_fused_block_kernel(%arg0: i32, %arg1: memref<128x128xbf16, #tpu.memory_space<vmem>>, %arg2: memref<128x128xbf16, #tpu.memory_space<vmem>>, %arg3: memref<1x128xf32, #tpu.memory_space<vmem>>, %arg4: memref<1x128xf32, #tpu.memory_space<vmem>>, %arg5: memref<128x1024xbf16, #tpu.memory_space<vmem>>, %arg6: memref<1x1024xf32, #tpu.memory_space<vmem>>, %arg7: memref<1x1024xf32, #tpu.memory_space<vmem>>, %arg8: memref<128x1024xf32, #tpu.memory_space<vmem>>) attributes {dimension_semantics = [#tpu.dimension_semantics<parallel>], iteration_bounds = array<i64: 2>, scalar_prefetch = 0 : i64, scratch_operands = 0 : i64, tpu.core_type = #tpu.core_type<tc>, window_params = [{pipeline_mode = #tpu.pipeline_mode<synchronous>, transform_indices = @transform_0, window_bounds = array<i64: 128, 128>}, {pipeline_mode = #tpu.pipeline_mode<synchronous>, transform_indices = @transform_1, window_bounds = array<i64: 128, 128>}, {pipeline_mode = #tpu.pipeline_mode<synchronous>, transform_indices = @transform_2, window_bounds = array<i64: 1, 128>}, {pipeline_mode = #tpu.pipeline_mode<synchronous>, transform_indices = @transform_3, window_bounds = array<i64: 1, 128>}, {transform_indices = @transform_4, window_bounds = array<i64: 128, 1024>}, {transform_indices = @transform_5, window_bounds = array<i64: 1, 1024>}, {transform_indices = @transform_6, window_bounds = array<i64: 1, 1024>}, {transform_indices = @transform_7, window_bounds = array<i64: 128, 1024>}]} {
    %c0 = arith.constant 0 : index
    %c0_0 = arith.constant 0 : index
    %0 = vector.load %arg1[%c0, %c0_0] : memref<128x128xbf16, #tpu.memory_space<vmem>>, vector<128x128xbf16>
    %c0_1 = arith.constant 0 : index
    %c0_2 = arith.constant 0 : index
    %1 = vector.load %arg2[%c0_1, %c0_2] : memref<128x128xbf16, #tpu.memory_space<vmem>>, vector<128x128xbf16>
    %cst = arith.constant dense<0.000000e+00> : vector<128x128xf32>
    %2 = tpu.matmul %0, %1, %cst {dimension_numbers = #tpu.dot_dimension_numbers<[1], [0], [0], [1], [0, 0, 1, 1], [], []>} : vector<128x128xbf16>, vector<128x128xbf16>, vector<128x128xf32> -> vector<128x128xf32>
    %cst_3 = arith.constant dense<0.000000e+00> : vector<128xf32>
    %3 = vector.multi_reduction <add>, %2, %cst_3 [0] : vector<128x128xf32> to vector<128xf32>
    %4 = vector.shape_cast %3 : vector<128xf32> to vector<1x128xf32>
    %5 = arith.mulf %2, %2 : vector<128x128xf32>
    %cst_4 = arith.constant dense<0.000000e+00> : vector<128xf32>
    %6 = vector.multi_reduction <add>, %5, %cst_4 [0] : vector<128x128xf32> to vector<128xf32>
    %7 = vector.shape_cast %6 : vector<128xf32> to vector<1x128xf32>
    %c64_i32 = arith.constant 64 : i32
    %8 = tpu.dynamic_rotate %4 by %c64_i32 dim 1 : vector<1x128xf32>, i32 -> vector<1x128xf32>
    %9 = arith.addf %4, %8 : vector<1x128xf32>
    %c64_i32_5 = arith.constant 64 : i32
    %10 = tpu.dynamic_rotate %7 by %c64_i32_5 dim 1 : vector<1x128xf32>, i32 -> vector<1x128xf32>
    %11 = arith.addf %7, %10 : vector<1x128xf32>
    %c32_i32 = arith.constant 32 : i32
    %12 = tpu.dynamic_rotate %9 by %c32_i32 dim 1 : vector<1x128xf32>, i32 -> vector<1x128xf32>
    %13 = arith.addf %9, %12 : vector<1x128xf32>
    %c32_i32_6 = arith.constant 32 : i32
    %14 = tpu.dynamic_rotate %11 by %c32_i32_6 dim 1 : vector<1x128xf32>, i32 -> vector<1x128xf32>
    %15 = arith.addf %11, %14 : vector<1x128xf32>
    %cst_7 = arith.constant 0.001953125 : f32
    %16 = vector.broadcast %cst_7 : f32 to vector<1x128xf32>
    %17 = arith.mulf %13, %16 : vector<1x128xf32>
    %cst_8 = arith.constant 0.001953125 : f32
    %18 = vector.broadcast %cst_8 : f32 to vector<1x128xf32>
    %19 = arith.mulf %15, %18 : vector<1x128xf32>
    %20 = arith.mulf %17, %17 : vector<1x128xf32>
    %21 = arith.subf %19, %20 : vector<1x128xf32>
    %c0_9 = arith.constant 0 : index
    %c0_10 = arith.constant 0 : index
    %22 = vector.load %arg3[%c0_9, %c0_10] : memref<1x128xf32, #tpu.memory_space<vmem>>, vector<1x128xf32>
    %cst_11 = arith.constant 9.99999974E-6 : f32
    %23 = vector.broadcast %cst_11 : f32 to vector<1x128xf32>
    %24 = arith.addf %21, %23 : vector<1x128xf32>
    %25 = math.rsqrt %24 : vector<1x128xf32>
    %26 = arith.mulf %22, %25 : vector<1x128xf32>
    %c0_12 = arith.constant 0 : index
    %c0_13 = arith.constant 0 : index
    %27 = vector.load %arg4[%c0_12, %c0_13] : memref<1x128xf32, #tpu.memory_space<vmem>>, vector<1x128xf32>
    %28 = arith.mulf %17, %26 : vector<1x128xf32>
    %29 = arith.subf %27, %28 : vector<1x128xf32>
    %30 = vector.broadcast %26 : vector<1x128xf32> to vector<128x128xf32>
    %31 = arith.mulf %2, %30 : vector<128x128xf32>
    %32 = vector.broadcast %29 : vector<1x128xf32> to vector<128x128xf32>
    %33 = arith.addf %31, %32 : vector<128x128xf32>
    %cst_14 = arith.constant 0.000000e+00 : f32
    %34 = vector.broadcast %cst_14 : f32 to vector<128x128xf32>
    %35 = arith.maximumf %33, %34 : vector<128x128xf32>
    %36 = arith.truncf %35 : vector<128x128xf32> to vector<128x128xbf16>
    %c0_15 = arith.constant 0 : index
    %c0_16 = arith.constant 0 : index
    %37 = vector.load %arg5[%c0_15, %c0_16] : memref<128x1024xbf16, #tpu.memory_space<vmem>>, vector<128x1024xbf16>
    %cst_17 = arith.constant dense<0.000000e+00> : vector<128x1024xf32>
    %38 = tpu.matmul %36, %37, %cst_17 {dimension_numbers = #tpu.dot_dimension_numbers<[1], [0], [0], [1], [0, 0, 1, 1], [], []>} : vector<128x128xbf16>, vector<128x1024xbf16>, vector<128x1024xf32> -> vector<128x1024xf32>
    %cst_18 = arith.constant dense<0.000000e+00> : vector<1024xf32>
    %39 = vector.multi_reduction <add>, %38, %cst_18 [0] : vector<128x1024xf32> to vector<1024xf32>
    %40 = vector.shape_cast %39 : vector<1024xf32> to vector<1x1024xf32>
    %41 = arith.mulf %38, %38 : vector<128x1024xf32>
    %cst_19 = arith.constant dense<0.000000e+00> : vector<1024xf32>
    %42 = vector.multi_reduction <add>, %41, %cst_19 [0] : vector<128x1024xf32> to vector<1024xf32>
    %43 = vector.shape_cast %42 : vector<1024xf32> to vector<1x1024xf32>
    %c512_i32 = arith.constant 512 : i32
    %44 = tpu.dynamic_rotate %40 by %c512_i32 dim 1 : vector<1x1024xf32>, i32 -> vector<1x1024xf32>
    %45 = arith.addf %40, %44 : vector<1x1024xf32>
    %c512_i32_20 = arith.constant 512 : i32
    %46 = tpu.dynamic_rotate %43 by %c512_i32_20 dim 1 : vector<1x1024xf32>, i32 -> vector<1x1024xf32>
    %47 = arith.addf %43, %46 : vector<1x1024xf32>
    %c256_i32 = arith.constant 256 : i32
    %48 = tpu.dynamic_rotate %45 by %c256_i32 dim 1 : vector<1x1024xf32>, i32 -> vector<1x1024xf32>
    %49 = arith.addf %45, %48 : vector<1x1024xf32>
    %c256_i32_21 = arith.constant 256 : i32
    %50 = tpu.dynamic_rotate %47 by %c256_i32_21 dim 1 : vector<1x1024xf32>, i32 -> vector<1x1024xf32>
    %51 = arith.addf %47, %50 : vector<1x1024xf32>
    %c128_i32 = arith.constant 128 : i32
    %52 = tpu.dynamic_rotate %49 by %c128_i32 dim 1 : vector<1x1024xf32>, i32 -> vector<1x1024xf32>
    %53 = arith.addf %49, %52 : vector<1x1024xf32>
    %c128_i32_22 = arith.constant 128 : i32
    %54 = tpu.dynamic_rotate %51 by %c128_i32_22 dim 1 : vector<1x1024xf32>, i32 -> vector<1x1024xf32>
    %55 = arith.addf %51, %54 : vector<1x1024xf32>
    %c64_i32_23 = arith.constant 64 : i32
    %56 = tpu.dynamic_rotate %53 by %c64_i32_23 dim 1 : vector<1x1024xf32>, i32 -> vector<1x1024xf32>
    %57 = arith.addf %53, %56 : vector<1x1024xf32>
    %c64_i32_24 = arith.constant 64 : i32
    %58 = tpu.dynamic_rotate %55 by %c64_i32_24 dim 1 : vector<1x1024xf32>, i32 -> vector<1x1024xf32>
    %59 = arith.addf %55, %58 : vector<1x1024xf32>
    %cst_25 = arith.constant 4.8828125E-4 : f32
    %60 = vector.broadcast %cst_25 : f32 to vector<1x1024xf32>
    %61 = arith.mulf %57, %60 : vector<1x1024xf32>
    %cst_26 = arith.constant 4.8828125E-4 : f32
    %62 = vector.broadcast %cst_26 : f32 to vector<1x1024xf32>
    %63 = arith.mulf %59, %62 : vector<1x1024xf32>
    %64 = arith.mulf %61, %61 : vector<1x1024xf32>
    %65 = arith.subf %63, %64 : vector<1x1024xf32>
    %c0_27 = arith.constant 0 : index
    %c0_28 = arith.constant 0 : index
    %66 = vector.load %arg6[%c0_27, %c0_28] : memref<1x1024xf32, #tpu.memory_space<vmem>>, vector<1x1024xf32>
    %cst_29 = arith.constant 9.99999974E-6 : f32
    %67 = vector.broadcast %cst_29 : f32 to vector<1x1024xf32>
    %68 = arith.addf %65, %67 : vector<1x1024xf32>
    %69 = math.rsqrt %68 : vector<1x1024xf32>
    %70 = arith.mulf %66, %69 : vector<1x1024xf32>
    %c0_30 = arith.constant 0 : index
    %c0_31 = arith.constant 0 : index
    %71 = vector.load %arg7[%c0_30, %c0_31] : memref<1x1024xf32, #tpu.memory_space<vmem>>, vector<1x1024xf32>
    %72 = arith.mulf %61, %70 : vector<1x1024xf32>
    %73 = arith.subf %71, %72 : vector<1x1024xf32>
    %74 = vector.broadcast %70 : vector<1x1024xf32> to vector<128x1024xf32>
    %75 = arith.mulf %38, %74 : vector<128x1024xf32>
    %76 = vector.broadcast %73 : vector<1x1024xf32> to vector<128x1024xf32>
    %77 = arith.addf %75, %76 : vector<128x1024xf32>
    %cst_32 = arith.constant 0.000000e+00 : f32
    %78 = vector.broadcast %cst_32 : f32 to vector<128x1024xf32>
    %79 = arith.maximumf %77, %78 : vector<128x1024xf32>
    %c0_33 = arith.constant 0 : index
    %c0_34 = arith.constant 0 : index
    %80 = vector.load %arg8[%c0_33, %c0_34] : memref<128x1024xf32, #tpu.memory_space<vmem>>, vector<128x1024xf32>
    tpu.vector_store %arg8[%c0_33, %c0_34], %79 {strides = array<i32>} : memref<128x1024xf32, #tpu.memory_space<vmem>>, vector<128x1024xf32>,
    return
  }
  func.func @transform_0(%arg0: i32) -> (i32, i32) {
    %c0_i32 = arith.constant 0 : i32
    %c0_i32_0 = arith.constant 0 : i32
    %c0_i32_1 = arith.constant 0 : i32
    return %c0_i32, %c0_i32_0 : i32, i32
  }
  func.func @transform_1(%arg0: i32) -> (i32, i32) {
    %c0_i32 = arith.constant 0 : i32
    %c0_i32_0 = arith.constant 0 : i32
    %c0_i32_1 = arith.constant 0 : i32
    return %c0_i32, %c0_i32_0 : i32, i32
  }
  func.func @transform_2(%arg0: i32) -> (i32, i32) {
    %c0_i32 = arith.constant 0 : i32
    %c0_i32_0 = arith.constant 0 : i32
    %c0_i32_1 = arith.constant 0 : i32
    return %c0_i32, %c0_i32_0 : i32, i32
  }
  func.func @transform_3(%arg0: i32) -> (i32, i32) {
    %c0_i32 = arith.constant 0 : i32
    %c0_i32_0 = arith.constant 0 : i32
    %c0_i32_1 = arith.constant 0 : i32
    return %c0_i32, %c0_i32_0 : i32, i32
  }
  func.func @transform_4(%arg0: i32) -> (i32, i32) {
    %c0_i32 = arith.constant 0 : i32
    %c0_i32_0 = arith.constant 0 : i32
    return %c0_i32, %arg0 : i32, i32
  }
  func.func @transform_5(%arg0: i32) -> (i32, i32) {
    %c0_i32 = arith.constant 0 : i32
    %c0_i32_0 = arith.constant 0 : i32
    return %c0_i32, %arg0 : i32, i32
  }
  func.func @transform_6(%arg0: i32) -> (i32, i32) {
    %c0_i32 = arith.constant 0 : i32
    %c0_i32_0 = arith.constant 0 : i32
    return %c0_i32, %arg0 : i32, i32
  }
  func.func @transform_7(%arg0: i32) -> (i32, i32) {
    %c0_i32 = arith.constant 0 : i32
    %c0_i32_0 = arith.constant 0 : i32
    return %c0_i32, %arg0 : i32, i32
  }
}

</mosaic_0001>

<llo_original>
// kernel: _lambda_.1
$region0: #{_lambda_.1}
  #allocation0 [shape = 'u32[]', space=smem, size = 0x4, offset = 0x4, fixed_abs, tag = 'smem constant byte address 0x4 - core index']
  #allocation1 [shape = 'u32[72,128]{1,0:T(1,128)}', space=vmem, size = 0x9000, scoped, tag = 'internal scratch']
  %s0 = inlined_call_operand.vmem [shape: bf16[128,128], index: 0, kind: input, shape index: {}]
  %s1 = inlined_call_operand.hbm [shape: bf16[128,128], index: 1, kind: input, shape index: {}]
  %s2 = inlined_call_operand.vmem [shape: f32[1,128], index: 2, kind: input, shape index: {}]
  %s3 = inlined_call_operand.vmem [shape: f32[1,128], index: 3, kind: input, shape index: {}]
  %s4 = inlined_call_operand.hbm [shape: bf16[128,2048], index: 4, kind: input, shape index: {}]
  %s5 = inlined_call_operand.vmem [shape: f32[1,2048], index: 5, kind: input, shape index: {}]
  %s6 = inlined_call_operand.vmem [shape: f32[1,2048], index: 6, kind: input, shape index: {}]
  %s7 = inlined_call_operand.vmem [shape: f32[128,2048], index: 7, kind: output, shape index: {}]
  %s8 = sld [smem:[#allocation0]]
  $region88: #{_lambda_.1} parent=0
    _
  %s10 = ssub.s32 1, %s8
  %s11 = scalar_select 0, %s10, %s8
  $region1: #{_lambda_.1} parent=0
    #allocation2 [shape = 'u8[32768]{0}', space=vmem, size = 0x8000, scoped, tag = 'input window, operand 1, single buffered']
    #allocation3 [shape = 's32[2]{0}', space=sflag, size = 0x8, scoped, tag = 'scoped memory for _lambda_.1']
    #allocation4 [shape = 'u8[524288]{0}', space=vmem, size = 0x80000, scoped, tag = 'input window, operand 4']
    #allocation5 [shape = 's32[2]{0}', space=sflag, size = 0x8, scoped, tag = 'scoped memory for _lambda_.1']
    #allocation6 [shape = 'u8[1048576]{0}', space=vmem, size = 0x100000, scoped, tag = 'output window, operand 0']
    %12 = vsyncpa [#allocation3], 0
    %13 = vsyncpa [#allocation5], 0
    %s14 = scalar_lea.sflag [#allocation5], 1
    %15 = vsyncpa %s14, 0
    loop: start=0, step=1, limit=4
    $region2: #{_lambda_.1} parent=1 // loop_pre_header
      _
    $region3: #{_lambda_.1} parent=1 // loop_header
      %s17 = sphi 0, %s21
      %p18 = scmp.ge.s32.totalorder %s17, 4
      %s25 = sphi 0, %s25
      %s27 = sphi 0, %s25
      %s28 = sphi 0, %s27
      %s42 = sphi 0, %s28
      %s46 = sphi 0, %s46
      %s48 = sphi 0, %s46
      %s49 = sphi 0, %s48
      %s63 = sphi 0, %s49
      %s67 = sphi 0, %s67
      %s69 = sphi 0, %s67
      %s70 = sphi 0, %s69
      %s84 = sphi 0, %s70
      %s88 = sphi 0, %s88
      %s90 = sphi 0, %s88
      %s91 = sphi 0, %s90
      %s105 = sphi 0, %s91
      %s111 = sphi 0, %s113
      %s114 = sphi 0, %s111
      %s115 = sphi 0, %s114
      %s131 = sphi 0, %s115
      %s137 = sphi 0, %s139
      %s140 = sphi 0, %s137
      %s141 = sphi 0, %s140
      %s157 = sphi 0, %s141
      %s163 = sphi 0, %s165
      %s166 = sphi 0, %s163
      %s167 = sphi 0, %s166
      %s183 = sphi 0, %s167
      %s189 = sphi 0, %s191
      %s192 = sphi 0, %s189
      %s193 = sphi 0, %s192
      %s209 = sphi 0, %s193
    $region4: #{_lambda_.1} parent=1 // loop_header_branch
      %20 = sbr.rel (%p18) target = $region8
    $region5: #{_lambda_.1} parent=1 // loop_body
      %s22 = ssub.s32 %s17, 1
      %s23 = ssub.s32 %s17, 2
      %s24 = sadd.s32 %s17, 1
      %s26 = sadd.s32 %s25, 1
      %p29 = scmp.eq.s32.totalorder %s17, 1
      %p30 = scmp.ne.s32.totalorder %s25, %s27
      %p31 = scmp.eq.s32.totalorder %s17, 0
      %p32 = por %p30, %p31
      %p33 = scmp.ne.s32.totalorder %s25, %s27
      %p34 = scmp.eq.s32.totalorder %s22, 1
      %p35 = por %p33, %p34
      %p36 = scmp.ne.s32.totalorder %s27, %s28
      %p37 = scmp.eq.s32.totalorder %s22, 0
      %p38 = por %p36, %p37
      %p39 = scmp.ne.s32.totalorder %s27, %s28
      %p40 = scmp.eq.s32.totalorder %s23, 1
      %p41 = por %p39, %p40
      %p43 = scmp.ne.s32.totalorder %s28, %s42
      %p44 = scmp.eq.s32.totalorder %s23, 0
      %p45 = por %p43, %p44
      %s47 = sadd.s32 %s46, 1
      %p50 = scmp.eq.s32.totalorder %s17, 1
      %p51 = scmp.ne.s32.totalorder %s46, %s48
      %p52 = scmp.eq.s32.totalorder %s17, 0
      %p53 = por %p51, %p52
      %p54 = scmp.ne.s32.totalorder %s46, %s48
      %p55 = scmp.eq.s32.totalorder %s22, 1
      %p56 = por %p54, %p55
      %p57 = scmp.ne.s32.totalorder %s48, %s49
      %p58 = scmp.eq.s32.totalorder %s22, 0
      %p59 = por %p57, %p58
      %p60 = scmp.ne.s32.totalorder %s48, %s49
      %p61 = scmp.eq.s32.totalorder %s23, 1
      %p62 = por %p60, %p61
      %p64 = scmp.ne.s32.totalorder %s49, %s63
      %p65 = scmp.eq.s32.totalorder %s23, 0
      %p66 = por %p64, %p65
      %s68 = sadd.s32 %s67, 1
      %p71 = scmp.eq.s32.totalorder %s17, 1
      %p72 = scmp.ne.s32.totalorder %s67, %s69
      %p73 = scmp.eq.s32.totalorder %s17, 0
      %p74 = por %p72, %p73
      %p75 = scmp.ne.s32.totalorder %s67, %s69
      %p76 = scmp.eq.s32.totalorder %s22, 1
      %p77 = por %p75, %p76
      %p78 = scmp.ne.s32.totalorder %s69, %s70
      %p79 = scmp.eq.s32.totalorder %s22, 0
      %p80 = por %p78, %p79
      %p81 = scmp.ne.s32.totalorder %s69, %s70
      %p82 = scmp.eq.s32.totalorder %s23, 1
      %p83 = por %p81, %p82
      %p85 = scmp.ne.s32.totalorder %s70, %s84
      %p86 = scmp.eq.s32.totalorder %s23, 0
      %p87 = por %p85, %p86
      %s89 = sadd.s32 %s88, 1
      %p92 = scmp.eq.s32.totalorder %s17, 1
      %p93 = scmp.ne.s32.totalorder %s88, %s90
      %p94 = scmp.eq.s32.totalorder %s17, 0
      %p95 = por %p93, %p94
      %p96 = scmp.ne.s32.totalorder %s88, %s90
      %p97 = scmp.eq.s32.totalorder %s22, 1
      %p98 = por %p96, %p97
      %p99 = scmp.ne.s32.totalorder %s90, %s91
      %p100 = scmp.eq.s32.totalorder %s22, 0
      %p101 = por %p99, %p100
      %p102 = scmp.ne.s32.totalorder %s90, %s91
      %p103 = scmp.eq.s32.totalorder %s23, 1
      %p104 = por %p102, %p103
      %p106 = scmp.ne.s32.totalorder %s91, %s105
      %p107 = scmp.eq.s32.totalorder %s23, 0
      %p108 = por %p106, %p107
      %s109 = ssub.s32 %s17, %s24
      %p110 = scmp.eq.s32.totalorder %s109, 0
      %s112 = sadd.s32 %s111, 1
      %s113 = scalar_select %p110, %s111, %s112
      %p116 = pneg %p110
      %p117 = scmp.eq.s32.totalorder %s17, 1
      %p118 = por %p116, %p117
      %p119 = scmp.ne.s32.totalorder %s111, %s114
      %p120 = scmp.eq.s32.totalorder %s17, 0
      %p121 = por %p119, %p120
      %p122 = scmp.ne.s32.totalorder %s111, %s114
      %p123 = scmp.eq.s32.totalorder %s22, 1
      %p124 = por %p122, %p123
      %p125 = scmp.ne.s32.totalorder %s114, %s115
      %p126 = scmp.eq.s32.totalorder %s22, 0
      %p127 = por %p125, %p126
      %p128 = scmp.ne.s32.totalorder %s114, %s115
      %p129 = scmp.eq.s32.totalorder %s23, 1
      %p130 = por %p128, %p129
      %p132 = scmp.ne.s32.totalorder %s115, %s131
      %p133 = scmp.eq.s32.totalorder %s23, 0
      %p134 = por %p132, %p133
      %s135 = ssub.s32 %s17, %s24
      %p136 = scmp.eq.s32.totalorder %s135, 0
      %s138 = sadd.s32 %s137, 1
      %s139 = scalar_select %p136, %s137, %s138
      %p142 = pneg %p136
      %p143 = scmp.eq.s32.totalorder %s17, 1
      %p144 = por %p142, %p143
      %p145 = scmp.ne.s32.totalorder %s137, %s140
      %p146 = scmp.eq.s32.totalorder %s17, 0
      %p147 = por %p145, %p146
      %p148 = scmp.ne.s32.totalorder %s137, %s140
      %p149 = scmp.eq.s32.totalorder %s22, 1
      %p150 = por %p148, %p149
      %p151 = scmp.ne.s32.totalorder %s140, %s141
      %p152 = scmp.eq.s32.totalorder %s22, 0
      %p153 = por %p151, %p152
      %p154 = scmp.ne.s32.totalorder %s140, %s141
      %p155 = scmp.eq.s32.totalorder %s23, 1
      %p156 = por %p154, %p155
      %p158 = scmp.ne.s32.totalorder %s141, %s157
      %p159 = scmp.eq.s32.totalorder %s23, 0
      %p160 = por %p158, %p159
      %s161 = ssub.s32 %s17, %s24
      %p162 = scmp.eq.s32.totalorder %s161, 0
      %s164 = sadd.s32 %s163, 1
      %s165 = scalar_select %p162, %s163, %s164
      %p168 = pneg %p162
      %p169 = scmp.eq.s32.totalorder %s17, 1
      %p170 = por %p168, %p169
      %p171 = scmp.ne.s32.totalorder %s163, %s166
      %p172 = scmp.eq.s32.totalorder %s17, 0
      %p173 = por %p171, %p172
      %p174 = scmp.ne.s32.totalorder %s163, %s166
      %p175 = scmp.eq.s32.totalorder %s22, 1
      %p176 = por %p174, %p175
      %p177 = scmp.ne.s32.totalorder %s166, %s167
      %p178 = scmp.eq.s32.totalorder %s22, 0
      %p179 = por %p177, %p178
      %p180 = scmp.ne.s32.totalorder %s166, %s167
      %p181 = scmp.eq.s32.totalorder %s23, 1
      %p182 = por %p180, %p181
      %p184 = scmp.ne.s32.totalorder %s167, %s183
      %p185 = scmp.eq.s32.totalorder %s23, 0
      %p186 = por %p184, %p185
      %s187 = ssub.s32 %s17, %s24
      %p188 = scmp.eq.s32.totalorder %s187, 0
      %s190 = sadd.s32 %s189, 1
      %s191 = scalar_select %p188, %s189, %s190
      %p194 = pneg %p188
      %p195 = scmp.eq.s32.totalorder %s17, 1
      %p196 = por %p194, %p195
      %p197 = scmp.ne.s32.totalorder %s189, %s192
      %p198 = scmp.eq.s32.totalorder %s17, 0
      %p199 = por %p197, %p198
      %p200 = scmp.ne.s32.totalorder %s189, %s192
      %p201 = scmp.eq.s32.totalorder %s22, 1
      %p202 = por %p200, %p201
      %p203 = scmp.ne.s32.totalorder %s192, %s193
      %p204 = scmp.eq.s32.totalorder %s22, 0
      %p205 = por %p203, %p204
      %p206 = scmp.ne.s32.totalorder %s192, %s193
      %p207 = scmp.eq.s32.totalorder %s23, 1
      %p208 = por %p206, %p207
      %p210 = scmp.ne.s32.totalorder %s193, %s209
      %p211 = scmp.eq.s32.totalorder %s23, 0
      %p212 = por %p210, %p211
      %p213 = scmp.le.s32.totalorder 1, %s17
      %p214 = scmp.lt.s32.totalorder %s17, 3
      %p215 = pnand %p213, %p214
      %p216 = pneg %p215
      // Predicated region
      $region9: #{_lambda_.1} parent=5 // pred_check
        _
      $region10: #{_lambda_.1} parent=5 // pred_check_branch
        %218 = sbr.rel (%p215) target = $region12
      $region11: #{_lambda_.1} parent=5 // pred_region
        %s219 = ssub.s32 %s17, 1
        // Predicated region
        $region13: #{_lambda_.1} parent=11 // pred_check
          %p220 = pneg %p38
        $region14: #{_lambda_.1} parent=11 // pred_check_branch
          %222 = sbr.rel (%p220) target = $region16
        $region15: #{_lambda_.1} parent=11 // pred_region
          _
        $region16: #{_lambda_.1} parent=11 // pred_fallthru
          _
        // Predicated region
        $region17: #{_lambda_.1} parent=11 // pred_check
          %p223 = pneg %p59
        $region18: #{_lambda_.1} parent=11 // pred_check_branch
          %225 = sbr.rel (%p223) target = $region20
        $region19: #{_lambda_.1} parent=11 // pred_region
          %227 = vsyncadd [#allocation3], 0
          %s228 = sshll.u32 %s1, 4
          %s229 = int_to_ptr.hbm [resolvable:$true] %s228
          %s230 = sshll.u32 [#allocation2], 4
          %s231 = int_to_ptr.vmem [resolvable:$true] %s230
          %236 = dma.hbm_to_vmem [thread:$0]  %s229, 1024, %s231, [#allocation3], 64, 64, 4
        $region20: #{_lambda_.1} parent=11 // pred_fallthru
          _
        // Predicated region
        $region21: #{_lambda_.1} parent=11 // pred_check
          %p237 = pneg %p80
        $region22: #{_lambda_.1} parent=11 // pred_check_branch
          %239 = sbr.rel (%p237) target = $region24
        $region23: #{_lambda_.1} parent=11 // pred_region
          _
        $region24: #{_lambda_.1} parent=11 // pred_fallthru
          _
        // Predicated region
        $region25: #{_lambda_.1} parent=11 // pred_check
          %p240 = pneg %p101
        $region26: #{_lambda_.1} parent=11 // pred_check_branch
          %242 = sbr.rel (%p240) target = $region28
        $region27: #{_lambda_.1} parent=11 // pred_region
          _
        $region28: #{_lambda_.1} parent=11 // pred_fallthru
          _
      $region12: #{_lambda_.1} parent=5 // pred_fallthru
        _
      %p243 = scmp.lt.s32.totalorder %s17, 2
      // Predicated region
      $region29: #{_lambda_.1} parent=5 // pred_check
        %p244 = pneg %p243
      $region30: #{_lambda_.1} parent=5 // pred_check_branch
        %246 = sbr.rel (%p244) target = $region32
      $region31: #{_lambda_.1} parent=5 // pred_region
        // Predicated region
        $region33: #{_lambda_.1} parent=31 // pred_check
          %p247 = pneg %p121
        $region34: #{_lambda_.1} parent=31 // pred_check_branch
          %249 = sbr.rel (%p247) target = $region36
        $region35: #{_lambda_.1} parent=31 // pred_region
          %s250 = sand.u32 %s111, 1
          %s251 = scalar_lea.sflag [#allocation5], %s250
          %s252 = sand.u32 %s111, 1
          %s253 = smul.addr %s252, 512
          %s254 = scalar_lea.vmem [#allocation4], %s253
          %s255 = smul.u32 8, %s17
          %257 = vsyncadd %s251, 0
          %s258 = smul.addr %s255, 4
          %s259 = scalar_lea.hbm %s4, %s258
          %s260 = sshll.u32 %s259, 4
          %s261 = int_to_ptr.hbm [resolvable:$true] %s260
          %s262 = sshll.u32 %s254, 4
          %s263 = int_to_ptr.vmem [resolvable:$true] %s262
          %268 = dma.hbm_to_vmem [thread:$0]  %s261, 8192, %s263, %s251, 1024, 512, 32
        $region36: #{_lambda_.1} parent=31 // pred_fallthru
          _
        // Predicated region
        $region37: #{_lambda_.1} parent=31 // pred_check
          %p269 = pneg %p147
        $region38: #{_lambda_.1} parent=31 // pred_check_branch
          %271 = sbr.rel (%p269) target = $region40
        $region39: #{_lambda_.1} parent=31 // pred_region
          %s272 = smul.u32 8, %s17
          %p273 = scmp.lt.s32.totalorder %s272, 15
          %s274 = scalar_select %p273, %s272, 15
          %s275 = scalar_lea.vmem %s5, %s274
          %s276 = smul.u32 8, %s17
        $region40: #{_lambda_.1} parent=31 // pred_fallthru
          _
        // Predicated region
        $region41: #{_lambda_.1} parent=31 // pred_check
          %p277 = pneg %p173
        $region42: #{_lambda_.1} parent=31 // pred_check_branch
          %279 = sbr.rel (%p277) target = $region44
        $region43: #{_lambda_.1} parent=31 // pred_region
          %s280 = smul.u32 8, %s17
          %p281 = scmp.lt.s32.totalorder %s280, 15
          %s282 = scalar_select %p281, %s280, 15
          %s283 = scalar_lea.vmem %s6, %s282
          %s284 = smul.u32 8, %s17
        $region44: #{_lambda_.1} parent=31 // pred_fallthru
          _
      $region32: #{_lambda_.1} parent=5 // pred_fallthru
        _
      %p285 = scmp.le.s32.totalorder 1, %s17
      %p286 = scmp.lt.s32.totalorder %s17, 3
      %p287 = pnand %p285, %p286
      %p288 = pneg %p287
      // Predicated region
      $region45: #{_lambda_.1} parent=5 // pred_check
        _
      $region46: #{_lambda_.1} parent=5 // pred_check_branch
        %290 = sbr.rel (%p287) target = $region48
      $region47: #{_lambda_.1} parent=5 // pred_region
        %s291 = ssub.s32 %s17, 1
        // Predicated region
        $region49: #{_lambda_.1} parent=47 // pred_check
          %p292 = pneg %p59
        $region50: #{_lambda_.1} parent=47 // pred_check_branch
          %294 = sbr.rel (%p292) target = $region52
        $region51: #{_lambda_.1} parent=47 // pred_region
          %296 = dma.done [#allocation3], 1024
        $region52: #{_lambda_.1} parent=47 // pred_fallthru
          _
        %s297 = sand.u32 %s114, 1
        %s298 = scalar_lea.sflag [#allocation5], %s297
        %s299 = sand.u32 %s114, 1
        %s300 = smul.addr %s299, 512
        %s301 = scalar_lea.vmem [#allocation4], %s300
        // Predicated region
        $region53: #{_lambda_.1} parent=47 // pred_check
          %p302 = pneg %p127
        $region54: #{_lambda_.1} parent=47 // pred_check_branch
          %304 = sbr.rel (%p302) target = $region56
        $region55: #{_lambda_.1} parent=47 // pred_region
          %306 = dma.done %s298, 8192
        $region56: #{_lambda_.1} parent=47 // pred_fallthru
          _
        %p307 = pneg %p38
        %p308 = pneg %p35
        %p309 = pneg %p59
        %p310 = pneg %p56
        %p311 = pneg %p80
        %p312 = pneg %p77
        %p313 = pneg %p101
        %p314 = pneg %p98
        %s315 = sand.u32 %s114, 1
        %s316 = scalar_lea.sflag [#allocation5], %s315
        %s317 = sand.u32 %s114, 1
        %s318 = smul.addr %s317, 512
        %s319 = scalar_lea.vmem [#allocation4], %s318
        %p320 = pneg %p127
        %p321 = pneg %p124
        %s322 = smul.u32 8, %s22
        %p323 = scmp.lt.s32.totalorder %s322, 15
        %s324 = scalar_select %p323, %s322, 15
        %s325 = scalar_lea.vmem %s5, %s324
        %p326 = pneg %p153
        %p327 = pneg %p150
        %s328 = smul.u32 8, %s22
        %p329 = scmp.lt.s32.totalorder %s328, 15
        %s330 = scalar_select %p329, %s328, 15
        %s331 = scalar_lea.vmem %s6, %s330
        %p332 = pneg %p179
        %p333 = pneg %p176
        %p334 = pneg %p205
        %p335 = pneg %p202
        %s336 = sand.u32 %s192, 1
        %s337 = sand.u32 %s192, 1
        %s338 = smul.addr %s337, 1024
        %s339 = scalar_lea.vmem [#allocation6], %s338
        %s340 = smul.u32 8, %s22
        %s341 = smul.u32 8, %s22
        %p342 = scmp.lt.s32.totalorder %s341, 15
        %s343 = scalar_select %p342, %s341, 15
        %s344 = scalar_lea.vmem %s5, %s343
        %s345 = smul.u32 8, %s22
        %s346 = smul.u32 8, %s22
        %p347 = scmp.lt.s32.totalorder %s346, 15
        %s348 = scalar_select %p347, %s346, 15
        %s349 = scalar_lea.vmem %s6, %s348
        %s350 = smul.u32 8, %s22
        %s351 = smul.u32 8, %s22
        %v352 = vld [vmem:[%s0] sm:$0xf]
        %v353 = vld [vmem:[%s0 + $0x4] sm:$0xf]
        %v354 = vld [vmem:[%s0 + $0x8] sm:$0xf]
        %v355 = vld [vmem:[%s0 + $0xc] sm:$0xf]
        %v356 = vld [vmem:[%s0 + $0x10] sm:$0xf]
        %v357 = vld [vmem:[%s0 + $0x14] sm:$0xf]
        %v358 = vld [vmem:[%s0 + $0x18] sm:$0xf]
        %v359 = vld [vmem:[%s0 + $0x1c] sm:$0xf]
        %v360 = vld [vmem:[%s0 + $0x20] sm:$0xf]
        %v361 = vld [vmem:[%s0 + $0x24] sm:$0xf]
        %v362 = vld [vmem:[%s0 + $0x28] sm:$0xf]
        %v363 = vld [vmem:[%s0 + $0x2c] sm:$0xf]
        %v364 = vld [vmem:[%s0 + $0x30] sm:$0xf]
        %v365 = vld [vmem:[%s0 + $0x34] sm:$0xf]
        %v366 = vld [vmem:[%s0 + $0x38] sm:$0xf]
        %v367 = vld [vmem:[%s0 + $0x3c] sm:$0xf]
        %v368 = vld [vmem:[#allocation2] sm:$0xf]
        %v369 = vld [vmem:[#allocation2 + $0x4] sm:$0xf]
        %v370 = vld [vmem:[#allocation2 + $0x8] sm:$0xf]
        %v371 = vld [vmem:[#allocation2 + $0xc] sm:$0xf]
        %v372 = vld [vmem:[#allocation2 + $0x10] sm:$0xf]
        %v373 = vld [vmem:[#allocation2 + $0x14] sm:$0xf]
        %v374 = vld [vmem:[#allocation2 + $0x18] sm:$0xf]
        %v375 = vld [vmem:[#allocation2 + $0x1c] sm:$0xf]
        %v376 = vld [vmem:[#allocation2 + $0x20] sm:$0xf]
        %v377 = vld [vmem:[#allocation2 + $0x24] sm:$0xf]
        %v378 = vld [vmem:[#allocation2 + $0x28] sm:$0xf]
        %v379 = vld [vmem:[#allocation2 + $0x2c] sm:$0xf]
        %v380 = vld [vmem:[#allocation2 + $0x30] sm:$0xf]
        %v381 = vld [vmem:[#allocation2 + $0x34] sm:$0xf]
        %v382 = vld [vmem:[#allocation2 + $0x38] sm:$0xf]
        %v383 = vld [vmem:[#allocation2 + $0x3c] sm:$0xf]
        %v400 = vunpack.c.l.b16 %v352
        %v401 = vunpack.c.l.b16 %v353
        %v402 = vunpack.c.l.b16 %v354
        %v403 = vunpack.c.l.b16 %v355
        %v404 = vunpack.c.l.b16 %v356
        %v405 = vunpack.c.l.b16 %v357
        %v406 = vunpack.c.l.b16 %v358
        %v407 = vunpack.c.l.b16 %v359
        %v408 = vunpack.c.l.b16 %v360
        %v409 = vunpack.c.l.b16 %v361
        %v410 = vunpack.c.l.b16 %v362
        %v411 = vunpack.c.l.b16 %v363
        %v412 = vunpack.c.l.b16 %v364
        %v413 = vunpack.c.l.b16 %v365
        %v414 = vunpack.c.l.b16 %v366
        %v415 = vunpack.c.l.b16 %v367
        %v416 = vpack.c.b16 %v401, %v400
        %v417 = vpack.c.b16 %v403, %v402
        %v418 = vpack.c.b16 %v405, %v404
        %v419 = vpack.c.b16 %v407, %v406
        %v420 = vpack.c.b16 %v409, %v408
        %v421 = vpack.c.b16 %v411, %v410
        %v422 = vpack.c.b16 %v413, %v412
        %v423 = vpack.c.b16 %v415, %v414
        %v448 = vunpack.c.l.b16 %v368
        %v449 = vunpack.c.l.b16 %v369
        %v450 = vunpack.c.l.b16 %v370
        %v451 = vunpack.c.l.b16 %v371
        %v452 = vunpack.c.l.b16 %v372
        %v453 = vunpack.c.l.b16 %v373
        %v454 = vunpack.c.l.b16 %v374
        %v455 = vunpack.c.l.b16 %v375
        %v456 = vunpack.c.l.b16 %v376
        %v457 = vunpack.c.l.b16 %v377
        %v458 = vunpack.c.l.b16 %v378
        %v459 = vunpack.c.l.b16 %v379
        %v460 = vunpack.c.l.b16 %v380
        %v461 = vunpack.c.l.b16 %v381
        %v462 = vunpack.c.l.b16 %v382
        %v463 = vunpack.c.l.b16 %v383
        %v464 = vpack.c.b16 %v449, %v448
        %v465 = vpack.c.b16 %v451, %v450
        %v466 = vpack.c.b16 %v453, %v452
        %v467 = vpack.c.b16 %v455, %v454
        %v468 = vpack.c.b16 %v457, %v456
        %v469 = vpack.c.b16 %v459, %v458
        %v470 = vpack.c.b16 %v461, %v460
        %v471 = vpack.c.b16 %v463, %v462
        %480 = vmatpush.bf16.msra.mxu0 %v471
        %481 = vmatpush.bf16.msra.mxu0 %v470
        %482 = vmatpush.bf16.msra.mxu0 %v469
        %483 = vmatpush.bf16.msra.mxu0 %v468
        %484 = vmatpush.bf16.msra.mxu0 %v467
        %485 = vmatpush.bf16.msra.mxu0 %v466
        %486 = vmatpush.bf16.msra.mxu0 %v465
        %487 = vmatpush.bf16.msra.mxu0 %v464
        %488 = vmatmul.bf16.gmra.mxu0 %v416
        %v489 = vpop.f32.mrf.mxu0
        %v490 = vadd.f32 0.0, %v489
        %v491 = vpop.f32.mrf.mxu0
        %v492 = vadd.f32 0.0, %v491
        %493 = vmatmul.bf16.gmra.mxu0 %v417
        %v494 = vpop.f32.mrf.mxu0
        %v495 = vadd.f32 0.0, %v494
        %v496 = vpop.f32.mrf.mxu0
        %v497 = vadd.f32 0.0, %v496
        %498 = vmatmul.bf16.gmra.mxu0 %v418
        %v499 = vpop.f32.mrf.mxu0
        %v500 = vadd.f32 0.0, %v499
        %v501 = vpop.f32.mrf.mxu0
        %v502 = vadd.f32 0.0, %v501
        %503 = vmatmul.bf16.gmra.mxu0 %v419
        %v504 = vpop.f32.mrf.mxu0
        %v505 = vadd.f32 0.0, %v504
        %v506 = vpop.f32.mrf.mxu0
        %v507 = vadd.f32 0.0, %v506
        %508 = vmatmul.bf16.gmra.mxu0 %v420
        %v509 = vpop.f32.mrf.mxu0
        %v510 = vadd.f32 0.0, %v509
        %v511 = vpop.f32.mrf.mxu0
        %v512 = vadd.f32 0.0, %v511
        %513 = vmatmul.bf16.gmra.mxu0 %v421
        %v514 = vpop.f32.mrf.mxu0
        %v515 = vadd.f32 0.0, %v514
        %v516 = vpop.f32.mrf.mxu0
        %v517 = vadd.f32 0.0, %v516
        %518 = vmatmul.bf16.gmra.mxu0 %v422
        %v519 = vpop.f32.mrf.mxu0
        %v520 = vadd.f32 0.0, %v519
        %v521 = vpop.f32.mrf.mxu0
        %v522 = vadd.f32 0.0, %v521
        %523 = vmatmul.bf16.gmra.mxu0 %v423
        %v524 = vpop.f32.mrf.mxu0
        %v525 = vadd.f32 0.0, %v524
        %v526 = vpop.f32.mrf.mxu0
        %v527 = vadd.f32 0.0, %v526
        %528 = vdwg.mxu0
        %v529 = vadd.f32 %v490, %v492
        %v530 = vadd.f32 %v529, %v495
        %v531 = vadd.f32 %v530, %v497
        %v532 = vadd.f32 %v531, %v500
        %v533 = vadd.f32 %v532, %v502
        %v534 = vadd.f32 %v533, %v505
        %v535 = vadd.f32 %v534, %v507
        %v536 = vadd.f32 %v535, %v510
        %v537 = vadd.f32 %v536, %v512
        %v538 = vadd.f32 %v537, %v515
        %v539 = vadd.f32 %v538, %v517
        %v540 = vadd.f32 %v539, %v520
        %v541 = vadd.f32 %v540, %v522
        %v542 = vadd.f32 %v541, %v525
        %v543 = vadd.f32 %v542, %v527
        %v544 = vrot.slane %v543, 4
        %v545 = vadd.f32 %v543, %v544
        %v546 = vrot.slane %v545, 2
        %v547 = vadd.f32 %v545, %v546
        %v548 = vrot.slane %v547, 1
        %v549 = vadd.f32 %v547, %v548
        %v550 = vmul.f32 %v490, %v490
        %v551 = vmul.f32 %v492, %v492
        %v552 = vmul.f32 %v495, %v495
        %v553 = vmul.f32 %v497, %v497
        %v554 = vmul.f32 %v500, %v500
        %v555 = vmul.f32 %v502, %v502
        %v556 = vmul.f32 %v505, %v505
        %v557 = vmul.f32 %v507, %v507
        %v558 = vmul.f32 %v510, %v510
        %v559 = vmul.f32 %v512, %v512
        %v560 = vmul.f32 %v515, %v515
        %v561 = vmul.f32 %v517, %v517
        %v562 = vmul.f32 %v520, %v520
        %v563 = vmul.f32 %v522, %v522
        %v564 = vmul.f32 %v525, %v525
        %v565 = vmul.f32 %v527, %v527
        %v566 = vadd.f32 %v550, %v551
        %v567 = vadd.f32 %v566, %v552
        %v568 = vadd.f32 %v567, %v553
        %v569 = vadd.f32 %v568, %v554
        %v570 = vadd.f32 %v569, %v555
        %v571 = vadd.f32 %v570, %v556
        %v572 = vadd.f32 %v571, %v557
        %v573 = vadd.f32 %v572, %v558
        %v574 = vadd.f32 %v573, %v559
        %v575 = vadd.f32 %v574, %v560
        %v576 = vadd.f32 %v575, %v561
        %v577 = vadd.f32 %v576, %v562
        %v578 = vadd.f32 %v577, %v563
        %v579 = vadd.f32 %v578, %v564
        %v580 = vadd.f32 %v579, %v565
        %v581 = vrot.slane %v580, 4
        %v582 = vadd.f32 %v580, %v581
        %v583 = vrot.slane %v582, 2
        %v584 = vadd.f32 %v582, %v583
        %v585 = vrot.slane %v584, 1
        %v586 = vadd.f32 %v584, %v585
        %587 = vrot.lane.b32.xlu0 %v549, 64
        %v588 = vpop.permute.xlu0 %587
        %v589 = vadd.f32 %v549, %v588
        %590 = vrot.lane.b32.xlu0 %v586, 64
        %v591 = vpop.permute.xlu0 %590
        %v592 = vadd.f32 %v586, %v591
        %593 = vrot.lane.b32.xlu0 %v589, 32
        %v594 = vpop.permute.xlu0 %593
        %v595 = vadd.f32 %v589, %v594
        %596 = vrot.lane.b32.xlu0 %v592, 32
        %v597 = vpop.permute.xlu0 %596
        %v598 = vadd.f32 %v592, %v597
        %v599 = vmul.f32 %v595, 0.001953125
        %v600 = vmul.f32 %v598, 0.001953125
        %v601 = vmul.f32 %v599, %v599
        %v602 = vsub.f32 %v600, %v601
        %v603 = vld [vmem:[%s2] sm:$0x1]
        %v604 = vadd.f32 %v602, 1e-05
        %v605 = vrsqrt.pop %v604
        %v606 = vmul.f32 %v605, %v604
        %v607 = vmul.f32 %v606, %v605
        %v608 = vmul.f32 0.5, %v607
        %v609 = vsub.f32 1.5, %v608
        %v610 = vmul.f32 %v605, %v609
        %vm611 = vweird.f32 %v604
        %vm612 = vweird.f32 %v605
        %vm613 = vmor %vm611, %vm612
        %v614 = vsel %vm613, %v605, %v610
        %v615 = vmul.f32 %v603, %v614
        %v616 = vld [vmem:[%s3] sm:$0x1]
        %v617 = vmul.f32 %v599, %v615
        %v618 = vsub.f32 %v616, %v617
        %v620 = vperm.slane %v615, 0
        %v622 = vmul.f32 %v490, %v620
        %v623 = vmul.f32 %v492, %v620
        %v624 = vmul.f32 %v495, %v620
        %v625 = vmul.f32 %v497, %v620
        %v626 = vmul.f32 %v500, %v620
        %v627 = vmul.f32 %v502, %v620
        %v628 = vmul.f32 %v505, %v620
        %v629 = vmul.f32 %v507, %v620
        %v630 = vmul.f32 %v510, %v620
        %v631 = vmul.f32 %v512, %v620
        %v632 = vmul.f32 %v515, %v620
        %v633 = vmul.f32 %v517, %v620
        %v634 = vmul.f32 %v520, %v620
        %v635 = vmul.f32 %v522, %v620
        %v636 = vmul.f32 %v525, %v620
        %v637 = vmul.f32 %v527, %v620
        %v639 = vperm.slane %v618, 0
        %v641 = vadd.f32 %v622, %v639
        %v642 = vadd.f32 %v623, %v639
        %v643 = vadd.f32 %v624, %v639
        %v644 = vadd.f32 %v625, %v639
        %v645 = vadd.f32 %v626, %v639
        %v646 = vadd.f32 %v627, %v639
        %v647 = vadd.f32 %v628, %v639
        %v648 = vadd.f32 %v629, %v639
        %v649 = vadd.f32 %v630, %v639
        %v650 = vadd.f32 %v631, %v639
        %v651 = vadd.f32 %v632, %v639
        %v652 = vadd.f32 %v633, %v639
        %v653 = vadd.f32 %v634, %v639
        %v654 = vadd.f32 %v635, %v639
        %v655 = vadd.f32 %v636, %v639
        %v656 = vadd.f32 %v637, %v639
        %v657 = vmax.f32 %v641, 0.0
        %v658 = vmax.f32 %v642, 0.0
        %v659 = vmax.f32 %v643, 0.0
        %v660 = vmax.f32 %v644, 0.0
        %v661 = vmax.f32 %v645, 0.0
        %v662 = vmax.f32 %v646, 0.0
        %v663 = vmax.f32 %v647, 0.0
        %v664 = vmax.f32 %v648, 0.0
        %v665 = vmax.f32 %v649, 0.0
        %v666 = vmax.f32 %v650, 0.0
        %v667 = vmax.f32 %v651, 0.0
        %v668 = vmax.f32 %v652, 0.0
        %v669 = vmax.f32 %v653, 0.0
        %v670 = vmax.f32 %v654, 0.0
        %v671 = vmax.f32 %v655, 0.0
        %v672 = vmax.f32 %v656, 0.0
        %v673 = vpack.c.bf16 %v658, %v657
        %v674 = vpack.c.bf16 %v660, %v659
        %v675 = vpack.c.bf16 %v662, %v661
        %v676 = vpack.c.bf16 %v664, %v663
        %v677 = vpack.c.bf16 %v666, %v665
        %v678 = vpack.c.bf16 %v668, %v667
        %v679 = vpack.c.bf16 %v670, %v669
        %v680 = vpack.c.bf16 %v672, %v671
        %v681 = vld [vmem:[%s301] sm:$0xff]
        %v682 = vld [vmem:[%s301 + $0x8] sm:$0xff]
        %v683 = vld [vmem:[%s301 + $0x10] sm:$0xff]
        %v684 = vld [vmem:[%s301 + $0x18] sm:$0xff]
        %v685 = vld [vmem:[%s301 + $0x20] sm:$0xff]
        %v686 = vld [vmem:[%s301 + $0x28] sm:$0xff]
        %v687 = vld [vmem:[%s301 + $0x30] sm:$0xff]
        %v688 = vld [vmem:[%s301 + $0x38] sm:$0xff]
        %v689 = vld [vmem:[%s301 + $0x40] sm:$0xff]
        %v690 = vld [vmem:[%s301 + $0x48] sm:$0xff]
        %v691 = vld [vmem:[%s301 + $0x50] sm:$0xff]
        %v692 = vld [vmem:[%s301 + $0x58] sm:$0xff]
        %v693 = vld [vmem:[%s301 + $0x60] sm:$0xff]
        %v694 = vld [vmem:[%s301 + $0x68] sm:$0xff]
        %v695 = vld [vmem:[%s301 + $0x70] sm:$0xff]
        %v696 = vld [vmem:[%s301 + $0x78] sm:$0xff]
        %v697 = vld [vmem:[%s301 + $0x80] sm:$0xff]
        %v698 = vld [vmem:[%s301 + $0x88] sm:$0xff]
        %v699 = vld [vmem:[%s301 + $0x90] sm:$0xff]
        %v700 = vld [vmem:[%s301 + $0x98] sm:$0xff]
        %v701 = vld [vmem:[%s301 + $0xa0] sm:$0xff]
        %v702 = vld [vmem:[%s301 + $0xa8] sm:$0xff]
        %v703 = vld [vmem:[%s301 + $0xb0] sm:$0xff]
        %v704 = vld [vmem:[%s301 + $0xb8] sm:$0xff]
        %v705 = vld [vmem:[%s301 + $0xc0] sm:$0xff]
        %v706 = vld [vmem:[%s301 + $0xc8] sm:$0xff]
        %v707 = vld [vmem:[%s301 + $0xd0] sm:$0xff]
        %v708 = vld [vmem:[%s301 + $0xd8] sm:$0xff]
        %v709 = vld [vmem:[%s301 + $0xe0] sm:$0xff]
        %v710 = vld [vmem:[%s301 + $0xe8] sm:$0xff]
        %v711 = vld [vmem:[%s301 + $0xf0] sm:$0xff]
        %v712 = vld [vmem:[%s301 + $0xf8] sm:$0xff]
        %v713 = vld [vmem:[%s301 + $0x100] sm:$0xff]
        %v714 = vld [vmem:[%s301 + $0x108] sm:$0xff]
        %v715 = vld [vmem:[%s301 + $0x110] sm:$0xff]
        %v716 = vld [vmem:[%s301 + $0x118] sm:$0xff]
        %v717 = vld [vmem:[%s301 + $0x120] sm:$0xff]
        %v718 = vld [vmem:[%s301 + $0x128] sm:$0xff]
        %v719 = vld [vmem:[%s301 + $0x130] sm:$0xff]
        %v720 = vld [vmem:[%s301 + $0x138] sm:$0xff]
        %v721 = vld [vmem:[%s301 + $0x140] sm:$0xff]
        %v722 = vld [vmem:[%s301 + $0x148] sm:$0xff]
        %v723 = vld [vmem:[%s301 + $0x150] sm:$0xff]
        %v724 = vld [vmem:[%s301 + $0x158] sm:$0xff]
        %v725 = vld [vmem:[%s301 + $0x160] sm:$0xff]
        %v726 = vld [vmem:[%s301 + $0x168] sm:$0xff]
        %v727 = vld [vmem:[%s301 + $0x170] sm:$0xff]
        %v728 = vld [vmem:[%s301 + $0x178] sm:$0xff]
        %v729 = vld [vmem:[%s301 + $0x180] sm:$0xff]
        %v730 = vld [vmem:[%s301 + $0x188] sm:$0xff]
        %v731 = vld [vmem:[%s301 + $0x190] sm:$0xff]
        %v732 = vld [vmem:[%s301 + $0x198] sm:$0xff]
        %v733 = vld [vmem:[%s301 + $0x1a0] sm:$0xff]
        %v734 = vld [vmem:[%s301 + $0x1a8] sm:$0xff]
        %v735 = vld [vmem:[%s301 + $0x1b0] sm:$0xff]
        %v736 = vld [vmem:[%s301 + $0x1b8] sm:$0xff]
        %v737 = vld [vmem:[%s301 + $0x1c0] sm:$0xff]
        %v738 = vld [vmem:[%s301 + $0x1c8] sm:$0xff]
        %v739 = vld [vmem:[%s301 + $0x1d0] sm:$0xff]
        %v740 = vld [vmem:[%s301 + $0x1d8] sm:$0xff]
        %v741 = vld [vmem:[%s301 + $0x1e0] sm:$0xff]
        %v742 = vld [vmem:[%s301 + $0x1e8] sm:$0xff]
        %v743 = vld [vmem:[%s301 + $0x1f0] sm:$0xff]
        %v744 = vld [vmem:[%s301 + $0x1f8] sm:$0xff]
        %v809 = vunpack.c.l.b16 %v681
        %v810 = vunpack.c.h.b16 %v681
        %v811 = vunpack.c.l.b16 %v682
        %v812 = vunpack.c.h.b16 %v682
        %v813 = vunpack.c.l.b16 %v683
        %v814 = vunpack.c.h.b16 %v683
        %v815 = vunpack.c.l.b16 %v684
        %v816 = vunpack.c.h.b16 %v684
        %v817 = vunpack.c.l.b16 %v685
        %v818 = vunpack.c.h.b16 %v685
        %v819 = vunpack.c.l.b16 %v686
        %v820 = vunpack.c.h.b16 %v686
        %v821 = vunpack.c.l.b16 %v687
        %v822 = vunpack.c.h.b16 %v687
        %v823 = vunpack.c.l.b16 %v688
        %v824 = vunpack.c.h.b16 %v688
        %v825 = vunpack.c.l.b16 %v689
        %v826 = vunpack.c.h.b16 %v689
        %v827 = vunpack.c.l.b16 %v690
        %v828 = vunpack.c.h.b16 %v690
        %v829 = vunpack.c.l.b16 %v691
        %v830 = vunpack.c.h.b16 %v691
        %v831 = vunpack.c.l.b16 %v692
        %v832 = vunpack.c.h.b16 %v692
        %v833 = vunpack.c.l.b16 %v693
        %v834 = vunpack.c.h.b16 %v693
        %v835 = vunpack.c.l.b16 %v694
        %v836 = vunpack.c.h.b16 %v694
        %v837 = vunpack.c.l.b16 %v695
        %v838 = vunpack.c.h.b16 %v695
        %v839 = vunpack.c.l.b16 %v696
        %v840 = vunpack.c.h.b16 %v696
        %v841 = vunpack.c.l.b16 %v697
        %v842 = vunpack.c.h.b16 %v697
        %v843 = vunpack.c.l.b16 %v698
        %v844 = vunpack.c.h.b16 %v698
        %v845 = vunpack.c.l.b16 %v699
        %v846 = vunpack.c.h.b16 %v699
        %v847 = vunpack.c.l.b16 %v700
        %v848 = vunpack.c.h.b16 %v700
        %v849 = vunpack.c.l.b16 %v701
        %v850 = vunpack.c.h.b16 %v701
        %v851 = vunpack.c.l.b16 %v702
        %v852 = vunpack.c.h.b16 %v702
        %v853 = vunpack.c.l.b16 %v703
        %v854 = vunpack.c.h.b16 %v703
        %v855 = vunpack.c.l.b16 %v704
        %v856 = vunpack.c.h.b16 %v704
        %v857 = vunpack.c.l.b16 %v705
        %v858 = vunpack.c.h.b16 %v705
        %v859 = vunpack.c.l.b16 %v706
        %v860 = vunpack.c.h.b16 %v706
        %v861 = vunpack.c.l.b16 %v707
        %v862 = vunpack.c.h.b16 %v707
        %v863 = vunpack.c.l.b16 %v708
        %v864 = vunpack.c.h.b16 %v708
        %v865 = vunpack.c.l.b16 %v709
        %v866 = vunpack.c.h.b16 %v709
        %v867 = vunpack.c.l.b16 %v710
        %v868 = vunpack.c.h.b16 %v710
        %v869 = vunpack.c.l.b16 %v711
        %v870 = vunpack.c.h.b16 %v711
        %v871 = vunpack.c.l.b16 %v712
        %v872 = vunpack.c.h.b16 %v712
        %v873 = vunpack.c.l.b16 %v713
        %v874 = vunpack.c.h.b16 %v713
        %v875 = vunpack.c.l.b16 %v714
        %v876 = vunpack.c.h.b16 %v714
        %v877 = vunpack.c.l.b16 %v715
        %v878 = vunpack.c.h.b16 %v715
        %v879 = vunpack.c.l.b16 %v716
        %v880 = vunpack.c.h.b16 %v716
        %v881 = vunpack.c.l.b16 %v717
        %v882 = vunpack.c.h.b16 %v717
        %v883 = vunpack.c.l.b16 %v718
        %v884 = vunpack.c.h.b16 %v718
        %v885 = vunpack.c.l.b16 %v719
        %v886 = vunpack.c.h.b16 %v719
        %v887 = vunpack.c.l.b16 %v720
        %v888 = vunpack.c.h.b16 %v720
        %v889 = vunpack.c.l.b16 %v721
        %v890 = vunpack.c.h.b16 %v721
        %v891 = vunpack.c.l.b16 %v722
        %v892 = vunpack.c.h.b16 %v722
        %v893 = vunpack.c.l.b16 %v723
        %v894 = vunpack.c.h.b16 %v723
        %v895 = vunpack.c.l.b16 %v724
        %v896 = vunpack.c.h.b16 %v724
        %v897 = vunpack.c.l.b16 %v725
        %v898 = vunpack.c.h.b16 %v725
        %v899 = vunpack.c.l.b16 %v726
        %v900 = vunpack.c.h.b16 %v726
        %v901 = vunpack.c.l.b16 %v727
        %v902 = vunpack.c.h.b16 %v727
        %v903 = vunpack.c.l.b16 %v728
        %v904 = vunpack.c.h.b16 %v728
        %v905 = vunpack.c.l.b16 %v729
        %v906 = vunpack.c.h.b16 %v729
        %v907 = vunpack.c.l.b16 %v730
        %v908 = vunpack.c.h.b16 %v730
        %v909 = vunpack.c.l.b16 %v731
        %v910 = vunpack.c.h.b16 %v731
        %v911 = vunpack.c.l.b16 %v732
        %v912 = vunpack.c.h.b16 %v732
        %v913 = vunpack.c.l.b16 %v733
        %v914 = vunpack.c.h.b16 %v733
        %v915 = vunpack.c.l.b16 %v734
        %v916 = vunpack.c.h.b16 %v734
        %v917 = vunpack.c.l.b16 %v735
        %v918 = vunpack.c.h.b16 %v735
        %v919 = vunpack.c.l.b16 %v736
        %v920 = vunpack.c.h.b16 %v736
        %v921 = vunpack.c.l.b16 %v737
        %v922 = vunpack.c.h.b16 %v737
        %v923 = vunpack.c.l.b16 %v738
        %v924 = vunpack.c.h.b16 %v738
        %v925 = vunpack.c.l.b16 %v739
        %v926 = vunpack.c.h.b16 %v739
        %v927 = vunpack.c.l.b16 %v740
        %v928 = vunpack.c.h.b16 %v740
        %v929 = vunpack.c.l.b16 %v741
        %v930 = vunpack.c.h.b16 %v741
        %v931 = vunpack.c.l.b16 %v742
        %v932 = vunpack.c.h.b16 %v742
        %v933 = vunpack.c.l.b16 %v743
        %v934 = vunpack.c.h.b16 %v743
        %v935 = vunpack.c.l.b16 %v744
        %v936 = vunpack.c.h.b16 %v744
        %v937 = vpack.c.b16 %v817, %v809
        %v938 = vpack.c.b16 %v818, %v810
        %v939 = vpack.c.b16 %v819, %v811
        %v940 = vpack.c.b16 %v820, %v812
        %v941 = vpack.c.b16 %v821, %v813
        %v942 = vpack.c.b16 %v822, %v814
        %v943 = vpack.c.b16 %v823, %v815
        %v944 = vpack.c.b16 %v824, %v816
        %v945 = vpack.c.b16 %v833, %v825
        %v946 = vpack.c.b16 %v834, %v826
        %v947 = vpack.c.b16 %v835, %v827
        %v948 = vpack.c.b16 %v836, %v828
        %v949 = vpack.c.b16 %v837, %v829
        %v950 = vpack.c.b16 %v838, %v830
        %v951 = vpack.c.b16 %v839, %v831
        %v952 = vpack.c.b16 %v840, %v832
        %v953 = vpack.c.b16 %v849, %v841
        %v954 = vpack.c.b16 %v850, %v842
        %v955 = vpack.c.b16 %v851, %v843
        %v956 = vpack.c.b16 %v852, %v844
        %v957 = vpack.c.b16 %v853, %v845
        %v958 = vpack.c.b16 %v854, %v846
        %v959 = vpack.c.b16 %v855, %v847
        %v960 = vpack.c.b16 %v856, %v848
        %v961 = vpack.c.b16 %v865, %v857
        %v962 = vpack.c.b16 %v866, %v858
        %v963 = vpack.c.b16 %v867, %v859
        %v964 = vpack.c.b16 %v868, %v860
        %v965 = vpack.c.b16 %v869, %v861
        %v966 = vpack.c.b16 %v870, %v862
        %v967 = vpack.c.b16 %v871, %v863
        %v968 = vpack.c.b16 %v872, %v864
        %v969 = vpack.c.b16 %v881, %v873
        %v970 = vpack.c.b16 %v882, %v874
        %v971 = vpack.c.b16 %v883, %v875
        %v972 = vpack.c.b16 %v884, %v876
        %v973 = vpack.c.b16 %v885, %v877
        %v974 = vpack.c.b16 %v886, %v878
        %v975 = vpack.c.b16 %v887, %v879
        %v976 = vpack.c.b16 %v888, %v880
        %v977 = vpack.c.b16 %v897, %v889
        %v978 = vpack.c.b16 %v898, %v890
        %v979 = vpack.c.b16 %v899, %v891
        %v980 = vpack.c.b16 %v900, %v892
        %v981 = vpack.c.b16 %v901, %v893
        %v982 = vpack.c.b16 %v902, %v894
        %v983 = vpack.c.b16 %v903, %v895
        %v984 = vpack.c.b16 %v904, %v896
        %v985 = vpack.c.b16 %v913, %v905
        %v986 = vpack.c.b16 %v914, %v906
        %v987 = vpack.c.b16 %v915, %v907
        %v988 = vpack.c.b16 %v916, %v908
        %v989 = vpack.c.b16 %v917, %v909
        %v990 = vpack.c.b16 %v918, %v910
        %v991 = vpack.c.b16 %v919, %v911
        %v992 = vpack.c.b16 %v920, %v912
        %v993 = vpack.c.b16 %v929, %v921
        %v994 = vpack.c.b16 %v930, %v922
        %v995 = vpack.c.b16 %v931, %v923
        %v996 = vpack.c.b16 %v932, %v924
        %v997 = vpack.c.b16 %v933, %v925
        %v998 = vpack.c.b16 %v934, %v926
        %v999 = vpack.c.b16 %v935, %v927
        %v1000 = vpack.c.b16 %v936, %v928
        %1065 = vmatpush.bf16.msra.mxu0 %v993
        %1066 = vmatpush.bf16.msra.mxu0 %v985
        %1067 = vmatpush.bf16.msra.mxu0 %v977
        %1068 = vmatpush.bf16.msra.mxu0 %v969
        %1069 = vmatpush.bf16.msra.mxu0 %v961
        %1070 = vmatpush.bf16.msra.mxu0 %v953
        %1071 = vmatpush.bf16.msra.mxu0 %v945
        %1072 = vmatpush.bf16.msra.mxu0 %v937
        %1073 = vmatmul.bf16.gmra.mxu0 %v673
        %v1074 = vpop.f32.mrf.mxu0
        %v1075 = vadd.f32 0.0, %v1074
        %v1076 = vpop.f32.mrf.mxu0
        %v1077 = vadd.f32 0.0, %v1076
        %1078 = vmatmul.bf16.gmra.mxu0 %v674
        %v1079 = vpop.f32.mrf.mxu0
        %v1080 = vadd.f32 0.0, %v1079
        %v1081 = vpop.f32.mrf.mxu0
        %v1082 = vadd.f32 0.0, %v1081
        %1083 = vmatmul.bf16.gmra.mxu0 %v675
        %v1084 = vpop.f32.mrf.mxu0
        %v1085 = vadd.f32 0.0, %v1084
        %v1086 = vpop.f32.mrf.mxu0
        %v1087 = vadd.f32 0.0, %v1086
        %1088 = vmatmul.bf16.gmra.mxu0 %v676
        %v1089 = vpop.f32.mrf.mxu0
        %v1090 = vadd.f32 0.0, %v1089
        %v1091 = vpop.f32.mrf.mxu0
        %v1092 = vadd.f32 0.0, %v1091
        %1093 = vmatmul.bf16.gmra.mxu0 %v677
        %v1094 = vpop.f32.mrf.mxu0
        %v1095 = vadd.f32 0.0, %v1094
        %v1096 = vpop.f32.mrf.mxu0
        %v1097 = vadd.f32 0.0, %v1096
        %1098 = vmatmul.bf16.gmra.mxu0 %v678
        %v1099 = vpop.f32.mrf.mxu0
        %v1100 = vadd.f32 0.0, %v1099
        %v1101 = vpop.f32.mrf.mxu0
        %v1102 = vadd.f32 0.0, %v1101
        %1103 = vmatmul.bf16.gmra.mxu0 %v679
        %v1104 = vpop.f32.mrf.mxu0
        %v1105 = vadd.f32 0.0, %v1104
        %v1106 = vpop.f32.mrf.mxu0
        %v1107 = vadd.f32 0.0, %v1106
        %1108 = vmatmul.bf16.gmra.mxu0 %v680
        %v1109 = vpop.f32.mrf.mxu0
        %v1110 = vadd.f32 0.0, %v1109
        %v1111 = vpop.f32.mrf.mxu0
        %v1112 = vadd.f32 0.0, %v1111
        %1113 = vdwg.mxu0
        %1114 = vmatpush.bf16.msra.mxu0 %v994
        %1115 = vmatpush.bf16.msra.mxu0 %v986
        %1116 = vmatpush.bf16.msra.mxu0 %v978
        %1117 = vmatpush.bf16.msra.mxu0 %v970
        %1118 = vmatpush.bf16.msra.mxu0 %v962
        %1119 = vmatpush.bf16.msra.mxu0 %v954
        %1120 = vmatpush.bf16.msra.mxu0 %v946
        %1121 = vmatpush.bf16.msra.mxu0 %v938
        %1122 = vmatmul.bf16.gmra.mxu0 %v673
        %v1123 = vpop.f32.mrf.mxu0
        %v1124 = vadd.f32 0.0, %v1123
        %v1125 = vpop.f32.mrf.mxu0
        %v1126 = vadd.f32 0.0, %v1125
        %1127 = vmatmul.bf16.gmra.mxu0 %v674
        %v1128 = vpop.f32.mrf.mxu0
        %v1129 = vadd.f32 0.0, %v1128
        %v1130 = vpop.f32.mrf.mxu0
        %v1131 = vadd.f32 0.0, %v1130
        %1132 = vmatmul.bf16.gmra.mxu0 %v675
        %v1133 = vpop.f32.mrf.mxu0
        %v1134 = vadd.f32 0.0, %v1133
        %v1135 = vpop.f32.mrf.mxu0
        %v1136 = vadd.f32 0.0, %v1135
        %1137 = vmatmul.bf16.gmra.mxu0 %v676
        %v1138 = vpop.f32.mrf.mxu0
        %v1139 = vadd.f32 0.0, %v1138
        %v1140 = vpop.f32.mrf.mxu0
        %v1141 = vadd.f32 0.0, %v1140
        %1142 = vmatmul.bf16.gmra.mxu0 %v677
        %v1143 = vpop.f32.mrf.mxu0
        %v1144 = vadd.f32 0.0, %v1143
        %v1145 = vpop.f32.mrf.mxu0
        %v1146 = vadd.f32 0.0, %v1145
        %1147 = vmatmul.bf16.gmra.mxu0 %v678
        %v1148 = vpop.f32.mrf.mxu0
        %v1149 = vadd.f32 0.0, %v1148
        %v1150 = vpop.f32.mrf.mxu0
        %v1151 = vadd.f32 0.0, %v1150
        %1152 = vmatmul.bf16.gmra.mxu0 %v679
        %v1153 = vpop.f32.mrf.mxu0
        %v1154 = vadd.f32 0.0, %v1153
        %v1155 = vpop.f32.mrf.mxu0
        %v1156 = vadd.f32 0.0, %v1155
        %1157 = vmatmul.bf16.gmra.mxu0 %v680
        %v1158 = vpop.f32.mrf.mxu0
        %v1159 = vadd.f32 0.0, %v1158
        %v1160 = vpop.f32.mrf.mxu0
        %v1161 = vadd.f32 0.0, %v1160
        %1162 = vdwg.mxu0
        %1163 = vmatpush.bf16.msra.mxu0 %v995
        %1164 = vmatpush.bf16.msra.mxu0 %v987
        %1165 = vmatpush.bf16.msra.mxu0 %v979
        %1166 = vmatpush.bf16.msra.mxu0 %v971
        %1167 = vmatpush.bf16.msra.mxu0 %v963
        %1168 = vmatpush.bf16.msra.mxu0 %v955
        %1169 = vmatpush.bf16.msra.mxu0 %v947
        %1170 = vmatpush.bf16.msra.mxu0 %v939
        %1171 = vmatmul.bf16.gmra.mxu0 %v673
        %v1172 = vpop.f32.mrf.mxu0
        %v1173 = vadd.f32 0.0, %v1172
        %v1174 = vpop.f32.mrf.mxu0
        %v1175 = vadd.f32 0.0, %v1174
        %1176 = vmatmul.bf16.gmra.mxu0 %v674
        %v1177 = vpop.f32.mrf.mxu0
        %v1178 = vadd.f32 0.0, %v1177
        %v1179 = vpop.f32.mrf.mxu0
        %v1180 = vadd.f32 0.0, %v1179
        %1181 = vmatmul.bf16.gmra.mxu0 %v675
        %v1182 = vpop.f32.mrf.mxu0
        %v1183 = vadd.f32 0.0, %v1182
        %v1184 = vpop.f32.mrf.mxu0
        %v1185 = vadd.f32 0.0, %v1184
        %1186 = vmatmul.bf16.gmra.mxu0 %v676
        %v1187 = vpop.f32.mrf.mxu0
        %v1188 = vadd.f32 0.0, %v1187
        %v1189 = vpop.f32.mrf.mxu0
        %v1190 = vadd.f32 0.0, %v1189
        %1191 = vmatmul.bf16.gmra.mxu0 %v677
        %v1192 = vpop.f32.mrf.mxu0
        %v1193 = vadd.f32 0.0, %v1192
        %v1194 = vpop.f32.mrf.mxu0
        %v1195 = vadd.f32 0.0, %v1194
        %1196 = vmatmul.bf16.gmra.mxu0 %v678
        %v1197 = vpop.f32.mrf.mxu0
        %v1198 = vadd.f32 0.0, %v1197
        %v1199 = vpop.f32.mrf.mxu0
        %v1200 = vadd.f32 0.0, %v1199
        %1201 = vmatmul.bf16.gmra.mxu0 %v679
        %v1202 = vpop.f32.mrf.mxu0
        %v1203 = vadd.f32 0.0, %v1202
        %v1204 = vpop.f32.mrf.mxu0
        %v1205 = vadd.f32 0.0, %v1204
        %1206 = vmatmul.bf16.gmra.mxu0 %v680
        %v1207 = vpop.f32.mrf.mxu0
        %v1208 = vadd.f32 0.0, %v1207
        %v1209 = vpop.f32.mrf.mxu0
        %v1210 = vadd.f32 0.0, %v1209
        %1211 = vdwg.mxu0
        %1212 = vmatpush.bf16.msra.mxu0 %v996
        %1213 = vmatpush.bf16.msra.mxu0 %v988
        %1214 = vmatpush.bf16.msra.mxu0 %v980
        %1215 = vmatpush.bf16.msra.mxu0 %v972
        %1216 = vmatpush.bf16.msra.mxu0 %v964
        %1217 = vmatpush.bf16.msra.mxu0 %v956
        %1218 = vmatpush.bf16.msra.mxu0 %v948
        %1219 = vmatpush.bf16.msra.mxu0 %v940
        %1220 = vmatmul.bf16.gmra.mxu0 %v673
        %v1221 = vpop.f32.mrf.mxu0
        %v1222 = vadd.f32 0.0, %v1221
        %v1223 = vpop.f32.mrf.mxu0
        %v1224 = vadd.f32 0.0, %v1223
        %1225 = vmatmul.bf16.gmra.mxu0 %v674
        %v1226 = vpop.f32.mrf.mxu0
        %v1227 = vadd.f32 0.0, %v1226
        %v1228 = vpop.f32.mrf.mxu0
        %v1229 = vadd.f32 0.0, %v1228
        %1230 = vmatmul.bf16.gmra.mxu0 %v675
        %v1231 = vpop.f32.mrf.mxu0
        %v1232 = vadd.f32 0.0, %v1231
        %v1233 = vpop.f32.mrf.mxu0
        %v1234 = vadd.f32 0.0, %v1233
        %1235 = vmatmul.bf16.gmra.mxu0 %v676
        %v1236 = vpop.f32.mrf.mxu0
        %v1237 = vadd.f32 0.0, %v1236
        %v1238 = vpop.f32.mrf.mxu0
        %v1239 = vadd.f32 0.0, %v1238
        %1240 = vmatmul.bf16.gmra.mxu0 %v677
        %v1241 = vpop.f32.mrf.mxu0
        %v1242 = vadd.f32 0.0, %v1241
        %v1243 = vpop.f32.mrf.mxu0
        %v1244 = vadd.f32 0.0, %v1243
        %1245 = vmatmul.bf16.gmra.mxu0 %v678
        %v1246 = vpop.f32.mrf.mxu0
        %v1247 = vadd.f32 0.0, %v1246
        %v1248 = vpop.f32.mrf.mxu0
        %v1249 = vadd.f32 0.0, %v1248
        %1250 = vmatmul.bf16.gmra.mxu0 %v679
        %v1251 = vpop.f32.mrf.mxu0
        %v1252 = vadd.f32 0.0, %v1251
        %v1253 = vpop.f32.mrf.mxu0
        %v1254 = vadd.f32 0.0, %v1253
        %1255 = vmatmul.bf16.gmra.mxu0 %v680
        %v1256 = vpop.f32.mrf.mxu0
        %v1257 = vadd.f32 0.0, %v1256
        %v1258 = vpop.f32.mrf.mxu0
        %v1259 = vadd.f32 0.0, %v1258
        %1260 = vdwg.mxu0
        %1261 = vmatpush.bf16.msra.mxu0 %v997
        %1262 = vmatpush.bf16.msra.mxu0 %v989
        %1263 = vmatpush.bf16.msra.mxu0 %v981
        %1264 = vmatpush.bf16.msra.mxu0 %v973
        %1265 = vmatpush.bf16.msra.mxu0 %v965
        %1266 = vmatpush.bf16.msra.mxu0 %v957
        %1267 = vmatpush.bf16.msra.mxu0 %v949
        %1268 = vmatpush.bf16.msra.mxu0 %v941
        %1269 = vmatmul.bf16.gmra.mxu0 %v673
        %v1270 = vpop.f32.mrf.mxu0
        %v1271 = vadd.f32 0.0, %v1270
        %v1272 = vpop.f32.mrf.mxu0
        %v1273 = vadd.f32 0.0, %v1272
        %1274 = vmatmul.bf16.gmra.mxu0 %v674
        %v1275 = vpop.f32.mrf.mxu0
        %v1276 = vadd.f32 0.0, %v1275
        %v1277 = vpop.f32.mrf.mxu0
        %v1278 = vadd.f32 0.0, %v1277
        %1279 = vmatmul.bf16.gmra.mxu0 %v675
        %v1280 = vpop.f32.mrf.mxu0
        %v1281 = vadd.f32 0.0, %v1280
        %v1282 = vpop.f32.mrf.mxu0
        %v1283 = vadd.f32 0.0, %v1282
        %1284 = vmatmul.bf16.gmra.mxu0 %v676
        %v1285 = vpop.f32.mrf.mxu0
        %v1286 = vadd.f32 0.0, %v1285
        %v1287 = vpop.f32.mrf.mxu0
        %v1288 = vadd.f32 0.0, %v1287
        %1289 = vmatmul.bf16.gmra.mxu0 %v677
        %v1290 = vpop.f32.mrf.mxu0
        %v1291 = vadd.f32 0.0, %v1290
        %v1292 = vpop.f32.mrf.mxu0
        %v1293 = vadd.f32 0.0, %v1292
        %1294 = vmatmul.bf16.gmra.mxu0 %v678
        %v1295 = vpop.f32.mrf.mxu0
        %v1296 = vadd.f32 0.0, %v1295
        %v1297 = vpop.f32.mrf.mxu0
        %v1298 = vadd.f32 0.0, %v1297
        %1299 = vmatmul.bf16.gmra.mxu0 %v679
        %v1300 = vpop.f32.mrf.mxu0
        %v1301 = vadd.f32 0.0, %v1300
        %v1302 = vpop.f32.mrf.mxu0
        %v1303 = vadd.f32 0.0, %v1302
        %1304 = vmatmul.bf16.gmra.mxu0 %v680
        %v1305 = vpop.f32.mrf.mxu0
        %v1306 = vadd.f32 0.0, %v1305
        %v1307 = vpop.f32.mrf.mxu0
        %v1308 = vadd.f32 0.0, %v1307
        %1309 = vdwg.mxu0
        %1310 = vmatpush.bf16.msra.mxu0 %v998
        %1311 = vmatpush.bf16.msra.mxu0 %v990
        %1312 = vmatpush.bf16.msra.mxu0 %v982
        %1313 = vmatpush.bf16.msra.mxu0 %v974
        %1314 = vmatpush.bf16.msra.mxu0 %v966
        %1315 = vmatpush.bf16.msra.mxu0 %v958
        %1316 = vmatpush.bf16.msra.mxu0 %v950
        %1317 = vmatpush.bf16.msra.mxu0 %v942
        %1318 = vmatmul.bf16.gmra.mxu0 %v673
        %v1319 = vpop.f32.mrf.mxu0
        %v1320 = vadd.f32 0.0, %v1319
        %v1321 = vpop.f32.mrf.mxu0
        %v1322 = vadd.f32 0.0, %v1321
        %1323 = vmatmul.bf16.gmra.mxu0 %v674
        %v1324 = vpop.f32.mrf.mxu0
        %v1325 = vadd.f32 0.0, %v1324
        %v1326 = vpop.f32.mrf.mxu0
        %v1327 = vadd.f32 0.0, %v1326
        %1328 = vmatmul.bf16.gmra.mxu0 %v675
        %v1329 = vpop.f32.mrf.mxu0
        %v1330 = vadd.f32 0.0, %v1329
        %v1331 = vpop.f32.mrf.mxu0
        %v1332 = vadd.f32 0.0, %v1331
        %1333 = vmatmul.bf16.gmra.mxu0 %v676
        %v1334 = vpop.f32.mrf.mxu0
        %v1335 = vadd.f32 0.0, %v1334
        %v1336 = vpop.f32.mrf.mxu0
        %v1337 = vadd.f32 0.0, %v1336
        %1338 = vmatmul.bf16.gmra.mxu0 %v677
        %v1339 = vpop.f32.mrf.mxu0
        %v1340 = vadd.f32 0.0, %v1339
        %v1341 = vpop.f32.mrf.mxu0
        %v1342 = vadd.f32 0.0, %v1341
        %1343 = vmatmul.bf16.gmra.mxu0 %v678
        %v1344 = vpop.f32.mrf.mxu0
        %v1345 = vadd.f32 0.0, %v1344
        %v1346 = vpop.f32.mrf.mxu0
        %v1347 = vadd.f32 0.0, %v1346
        %1348 = vmatmul.bf16.gmra.mxu0 %v679
        %v1349 = vpop.f32.mrf.mxu0
        %v1350 = vadd.f32 0.0, %v1349
        %v1351 = vpop.f32.mrf.mxu0
        %v1352 = vadd.f32 0.0, %v1351
        %1353 = vmatmul.bf16.gmra.mxu0 %v680
        %v1354 = vpop.f32.mrf.mxu0
        %v1355 = vadd.f32 0.0, %v1354
        %v1356 = vpop.f32.mrf.mxu0
        %v1357 = vadd.f32 0.0, %v1356
        %1358 = vdwg.mxu0
        %1359 = vmatpush.bf16.msra.mxu0 %v999
        %1360 = vmatpush.bf16.msra.mxu0 %v991
        %1361 = vmatpush.bf16.msra.mxu0 %v983
        %1362 = vmatpush.bf16.msra.mxu0 %v975
        %1363 = vmatpush.bf16.msra.mxu0 %v967
        %1364 = vmatpush.bf16.msra.mxu0 %v959
        %1365 = vmatpush.bf16.msra.mxu0 %v951
        %1366 = vmatpush.bf16.msra.mxu0 %v943
        %1367 = vmatmul.bf16.gmra.mxu0 %v673
        %v1368 = vpop.f32.mrf.mxu0
        %v1369 = vadd.f32 0.0, %v1368
        %v1370 = vpop.f32.mrf.mxu0
        %v1371 = vadd.f32 0.0, %v1370
        %1372 = vmatmul.bf16.gmra.mxu0 %v674
        %v1373 = vpop.f32.mrf.mxu0
        %v1374 = vadd.f32 0.0, %v1373
        %v1375 = vpop.f32.mrf.mxu0
        %v1376 = vadd.f32 0.0, %v1375
        %1377 = vmatmul.bf16.gmra.mxu0 %v675
        %v1378 = vpop.f32.mrf.mxu0
        %v1379 = vadd.f32 0.0, %v1378
        %v1380 = vpop.f32.mrf.mxu0
        %v1381 = vadd.f32 0.0, %v1380
        %1382 = vmatmul.bf16.gmra.mxu0 %v676
        %v1383 = vpop.f32.mrf.mxu0
        %v1384 = vadd.f32 0.0, %v1383
        %v1385 = vpop.f32.mrf.mxu0
        %v1386 = vadd.f32 0.0, %v1385
        %1387 = vmatmul.bf16.gmra.mxu0 %v677
        %v1388 = vpop.f32.mrf.mxu0
        %v1389 = vadd.f32 0.0, %v1388
        %v1390 = vpop.f32.mrf.mxu0
        %v1391 = vadd.f32 0.0, %v1390
        %1392 = vmatmul.bf16.gmra.mxu0 %v678
        %v1393 = vpop.f32.mrf.mxu0
        %v1394 = vadd.f32 0.0, %v1393
        %v1395 = vpop.f32.mrf.mxu0
        %v1396 = vadd.f32 0.0, %v1395
        %1397 = vmatmul.bf16.gmra.mxu0 %v679
        %v1398 = vpop.f32.mrf.mxu0
        %v1399 = vadd.f32 0.0, %v1398
        %v1400 = vpop.f32.mrf.mxu0
        %v1401 = vadd.f32 0.0, %v1400
        %1402 = vmatmul.bf16.gmra.mxu0 %v680
        %v1403 = vpop.f32.mrf.mxu0
        %v1404 = vadd.f32 0.0, %v1403
        %v1405 = vpop.f32.mrf.mxu0
        %v1406 = vadd.f32 0.0, %v1405
        %1407 = vdwg.mxu0
        %1408 = vmatpush.bf16.msra.mxu0 %v1000
        %1409 = vmatpush.bf16.msra.mxu0 %v992
        %1410 = vmatpush.bf16.msra.mxu0 %v984
        %1411 = vmatpush.bf16.msra.mxu0 %v976
        %1412 = vmatpush.bf16.msra.mxu0 %v968
        %1413 = vmatpush.bf16.msra.mxu0 %v960
        %1414 = vmatpush.bf16.msra.mxu0 %v952
        %1415 = vmatpush.bf16.msra.mxu0 %v944
        %1416 = vmatmul.bf16.gmra.mxu0 %v673
        %v1417 = vpop.f32.mrf.mxu0
        %v1418 = vadd.f32 0.0, %v1417
        %v1419 = vpop.f32.mrf.mxu0
        %v1420 = vadd.f32 0.0, %v1419
        %1421 = vmatmul.bf16.gmra.mxu0 %v674
        %v1422 = vpop.f32.mrf.mxu0
        %v1423 = vadd.f32 0.0, %v1422
        %v1424 = vpop.f32.mrf.mxu0
        %v1425 = vadd.f32 0.0, %v1424
        %1426 = vmatmul.bf16.gmra.mxu0 %v675
        %v1427 = vpop.f32.mrf.mxu0
        %v1428 = vadd.f32 0.0, %v1427
        %v1429 = vpop.f32.mrf.mxu0
        %v1430 = vadd.f32 0.0, %v1429
        %1431 = vmatmul.bf16.gmra.mxu0 %v676
        %v1432 = vpop.f32.mrf.mxu0
        %v1433 = vadd.f32 0.0, %v1432
        %v1434 = vpop.f32.mrf.mxu0
        %v1435 = vadd.f32 0.0, %v1434
        %1436 = vmatmul.bf16.gmra.mxu0 %v677
        %v1437 = vpop.f32.mrf.mxu0
        %v1438 = vadd.f32 0.0, %v1437
        %v1439 = vpop.f32.mrf.mxu0
        %v1440 = vadd.f32 0.0, %v1439
        %1441 = vmatmul.bf16.gmra.mxu0 %v678
        %v1442 = vpop.f32.mrf.mxu0
        %v1443 = vadd.f32 0.0, %v1442
        %v1444 = vpop.f32.mrf.mxu0
        %v1445 = vadd.f32 0.0, %v1444
        %1446 = vmatmul.bf16.gmra.mxu0 %v679
        %v1447 = vpop.f32.mrf.mxu0
        %v1448 = vadd.f32 0.0, %v1447
        %v1449 = vpop.f32.mrf.mxu0
        %v1450 = vadd.f32 0.0, %v1449
        %1451 = vmatmul.bf16.gmra.mxu0 %v680
        %v1452 = vpop.f32.mrf.mxu0
        %v1453 = vadd.f32 0.0, %v1452
        %v1454 = vpop.f32.mrf.mxu0
        %v1455 = vadd.f32 0.0, %v1454
        %1456 = vdwg.mxu0
        %v1457 = vadd.f32 %v1075, %v1077
        %v1458 = vadd.f32 %v1457, %v1080
        %v1459 = vadd.f32 %v1458, %v1082
        %v1460 = vadd.f32 %v1459, %v1085
        %v1461 = vadd.f32 %v1460, %v1087
        %v1462 = vadd.f32 %v1461, %v1090
        %v1463 = vadd.f32 %v1462, %v1092
        %v1464 = vadd.f32 %v1463, %v1095
        %v1465 = vadd.f32 %v1464, %v1097
        %v1466 = vadd.f32 %v1465, %v1100
        %v1467 = vadd.f32 %v1466, %v1102
        %v1468 = vadd.f32 %v1467, %v1105
        %v1469 = vadd.f32 %v1468, %v1107
        %v1470 = vadd.f32 %v1469, %v1110
        %v1471 = vadd.f32 %v1470, %v1112
        %v1472 = vrot.slane %v1471, 4
        %v1473 = vadd.f32 %v1471, %v1472
        %v1474 = vrot.slane %v1473, 2
        %v1475 = vadd.f32 %v1473, %v1474
        %v1476 = vrot.slane %v1475, 1
        %v1477 = vadd.f32 %v1475, %v1476
        %v1478 = vadd.f32 %v1124, %v1126
        %v1479 = vadd.f32 %v1478, %v1129
        %v1480 = vadd.f32 %v1479, %v1131
        %v1481 = vadd.f32 %v1480, %v1134
        %v1482 = vadd.f32 %v1481, %v1136
        %v1483 = vadd.f32 %v1482, %v1139
        %v1484 = vadd.f32 %v1483, %v1141
        %v1485 = vadd.f32 %v1484, %v1144
        %v1486 = vadd.f32 %v1485, %v1146
        %v1487 = vadd.f32 %v1486, %v1149
        %v1488 = vadd.f32 %v1487, %v1151
        %v1489 = vadd.f32 %v1488, %v1154
        %v1490 = vadd.f32 %v1489, %v1156
        %v1491 = vadd.f32 %v1490, %v1159
        %v1492 = vadd.f32 %v1491, %v1161
        %v1493 = vrot.slane %v1492, 4
        %v1494 = vadd.f32 %v1492, %v1493
        %v1495 = vrot.slane %v1494, 2
        %v1496 = vadd.f32 %v1494, %v1495
        %v1497 = vrot.slane %v1496, 1
        %v1498 = vadd.f32 %v1496, %v1497
        %v1499 = vadd.f32 %v1173, %v1175
        %v1500 = vadd.f32 %v1499, %v1178
        %v1501 = vadd.f32 %v1500, %v1180
        %v1502 = vadd.f32 %v1501, %v1183
        %v1503 = vadd.f32 %v1502, %v1185
        %v1504 = vadd.f32 %v1503, %v1188
        %v1505 = vadd.f32 %v1504, %v1190
        %v1506 = vadd.f32 %v1505, %v1193
        %v1507 = vadd.f32 %v1506, %v1195
        %v1508 = vadd.f32 %v1507, %v1198
        %v1509 = vadd.f32 %v1508, %v1200
        %v1510 = vadd.f32 %v1509, %v1203
        %v1511 = vadd.f32 %v1510, %v1205
        %v1512 = vadd.f32 %v1511, %v1208
        %v1513 = vadd.f32 %v1512, %v1210
        %v1514 = vrot.slane %v1513, 4
        %v1515 = vadd.f32 %v1513, %v1514
        %v1516 = vrot.slane %v1515, 2
        %v1517 = vadd.f32 %v1515, %v1516
        %v1518 = vrot.slane %v1517, 1
        %v1519 = vadd.f32 %v1517, %v1518
        %v1520 = vadd.f32 %v1222, %v1224
        %v1521 = vadd.f32 %v1520, %v1227
        %v1522 = vadd.f32 %v1521, %v1229
        %v1523 = vadd.f32 %v1522, %v1232
        %v1524 = vadd.f32 %v1523, %v1234
        %v1525 = vadd.f32 %v1524, %v1237
        %v1526 = vadd.f32 %v1525, %v1239
        %v1527 = vadd.f32 %v1526, %v1242
        %v1528 = vadd.f32 %v1527, %v1244
        %v1529 = vadd.f32 %v1528, %v1247
        %v1530 = vadd.f32 %v1529, %v1249
        %v1531 = vadd.f32 %v1530, %v1252
        %v1532 = vadd.f32 %v1531, %v1254
        %v1533 = vadd.f32 %v1532, %v1257
        %v1534 = vadd.f32 %v1533, %v1259
        %v1535 = vrot.slane %v1534, 4
        %v1536 = vadd.f32 %v1534, %v1535
        %v1537 = vrot.slane %v1536, 2
        %v1538 = vadd.f32 %v1536, %v1537
        %v1539 = vrot.slane %v1538, 1
        %v1540 = vadd.f32 %v1538, %v1539
        %v1541 = vadd.f32 %v1271, %v1273
        %v1542 = vadd.f32 %v1541, %v1276
        %v1543 = vadd.f32 %v1542, %v1278
        %v1544 = vadd.f32 %v1543, %v1281
        %v1545 = vadd.f32 %v1544, %v1283
        %v1546 = vadd.f32 %v1545, %v1286
        %v1547 = vadd.f32 %v1546, %v1288
        %v1548 = vadd.f32 %v1547, %v1291
        %v1549 = vadd.f32 %v1548, %v1293
        %v1550 = vadd.f32 %v1549, %v1296
        %v1551 = vadd.f32 %v1550, %v1298
        %v1552 = vadd.f32 %v1551, %v1301
        %v1553 = vadd.f32 %v1552, %v1303
        %v1554 = vadd.f32 %v1553, %v1306
        %v1555 = vadd.f32 %v1554, %v1308
        %v1556 = vrot.slane %v1555, 4
        %v1557 = vadd.f32 %v1555, %v1556
        %v1558 = vrot.slane %v1557, 2
        %v1559 = vadd.f32 %v1557, %v1558
        %v1560 = vrot.slane %v1559, 1
        %v1561 = vadd.f32 %v1559, %v1560
        %v1562 = vadd.f32 %v1320, %v1322
        %v1563 = vadd.f32 %v1562, %v1325
        %v1564 = vadd.f32 %v1563, %v1327
        %v1565 = vadd.f32 %v1564, %v1330
        %v1566 = vadd.f32 %v1565, %v1332
        %v1567 = vadd.f32 %v1566, %v1335
        %v1568 = vadd.f32 %v1567, %v1337
        %v1569 = vadd.f32 %v1568, %v1340
        %v1570 = vadd.f32 %v1569, %v1342
        %v1571 = vadd.f32 %v1570, %v1345
        %v1572 = vadd.f32 %v1571, %v1347
        %v1573 = vadd.f32 %v1572, %v1350
        %v1574 = vadd.f32 %v1573, %v1352
        %v1575 = vadd.f32 %v1574, %v1355
        %v1576 = vadd.f32 %v1575, %v1357
        %v1577 = vrot.slane %v1576, 4
        %v1578 = vadd.f32 %v1576, %v1577
        %v1579 = vrot.slane %v1578, 2
        %v1580 = vadd.f32 %v1578, %v1579
        %v1581 = vrot.slane %v1580, 1
        %v1582 = vadd.f32 %v1580, %v1581
        %v1583 = vadd.f32 %v1369, %v1371
        %v1584 = vadd.f32 %v1583, %v1374
        %v1585 = vadd.f32 %v1584, %v1376
        %v1586 = vadd.f32 %v1585, %v1379
        %v1587 = vadd.f32 %v1586, %v1381
        %v1588 = vadd.f32 %v1587, %v1384
        %v1589 = vadd.f32 %v1588, %v1386
        %v1590 = vadd.f32 %v1589, %v1389
        %v1591 = vadd.f32 %v1590, %v1391
        %v1592 = vadd.f32 %v1591, %v1394
        %v1593 = vadd.f32 %v1592, %v1396
        %v1594 = vadd.f32 %v1593, %v1399
        %v1595 = vadd.f32 %v1594, %v1401
        %v1596 = vadd.f32 %v1595, %v1404
        %v1597 = vadd.f32 %v1596, %v1406
        %v1598 = vrot.slane %v1597, 4
        %v1599 = vadd.f32 %v1597, %v1598
        %v1600 = vrot.slane %v1599, 2
        %v1601 = vadd.f32 %v1599, %v1600
        %v1602 = vrot.slane %v1601, 1
        %v1603 = vadd.f32 %v1601, %v1602
        %v1604 = vadd.f32 %v1418, %v1420
        %v1605 = vadd.f32 %v1604, %v1423
        %v1606 = vadd.f32 %v1605, %v1425
        %v1607 = vadd.f32 %v1606, %v1428
        %v1608 = vadd.f32 %v1607, %v1430
        %v1609 = vadd.f32 %v1608, %v1433
        %v1610 = vadd.f32 %v1609, %v1435
        %v1611 = vadd.f32 %v1610, %v1438
        %v1612 = vadd.f32 %v1611, %v1440
        %v1613 = vadd.f32 %v1612, %v1443
        %v1614 = vadd.f32 %v1613, %v1445
        %v1615 = vadd.f32 %v1614, %v1448
        %v1616 = vadd.f32 %v1615, %v1450
        %v1617 = vadd.f32 %v1616, %v1453
        %v1618 = vadd.f32 %v1617, %v1455
        %v1619 = vrot.slane %v1618, 4
        %v1620 = vadd.f32 %v1618, %v1619
        %v1621 = vrot.slane %v1620, 2
        %v1622 = vadd.f32 %v1620, %v1621
        %v1623 = vrot.slane %v1622, 1
        %v1624 = vadd.f32 %v1622, %v1623
        %v1625 = vmul.f32 %v1075, %v1075
        %v1626 = vmul.f32 %v1124, %v1124
        %v1627 = vmul.f32 %v1173, %v1173
        %v1628 = vmul.f32 %v1222, %v1222
        %v1629 = vmul.f32 %v1271, %v1271
        %v1630 = vmul.f32 %v1320, %v1320
        %v1631 = vmul.f32 %v1369, %v1369
        %v1632 = vmul.f32 %v1418, %v1418
        %v1633 = vmul.f32 %v1077, %v1077
        %v1634 = vmul.f32 %v1126, %v1126
        %v1635 = vmul.f32 %v1175, %v1175
        %v1636 = vmul.f32 %v1224, %v1224
        %v1637 = vmul.f32 %v1273, %v1273
        %v1638 = vmul.f32 %v1322, %v1322
        %v1639 = vmul.f32 %v1371, %v1371
        %v1640 = vmul.f32 %v1420, %v1420
        %v1641 = vmul.f32 %v1080, %v1080
        %v1642 = vmul.f32 %v1129, %v1129
        %v1643 = vmul.f32 %v1178, %v1178
        %v1644 = vmul.f32 %v1227, %v1227
        %v1645 = vmul.f32 %v1276, %v1276
        %v1646 = vmul.f32 %v1325, %v1325
        %v1647 = vmul.f32 %v1374, %v1374
        %v1648 = vmul.f32 %v1423, %v1423
        %v1649 = vmul.f32 %v1082, %v1082
        %v1650 = vmul.f32 %v1131, %v1131
        %v1651 = vmul.f32 %v1180, %v1180
        %v1652 = vmul.f32 %v1229, %v1229
        %v1653 = vmul.f32 %v1278, %v1278
        %v1654 = vmul.f32 %v1327, %v1327
        %v1655 = vmul.f32 %v1376, %v1376
        %v1656 = vmul.f32 %v1425, %v1425
        %v1657 = vmul.f32 %v1085, %v1085
        %v1658 = vmul.f32 %v1134, %v1134
        %v1659 = vmul.f32 %v1183, %v1183
        %v1660 = vmul.f32 %v1232, %v1232
        %v1661 = vmul.f32 %v1281, %v1281
        %v1662 = vmul.f32 %v1330, %v1330
        %v1663 = vmul.f32 %v1379, %v1379
        %v1664 = vmul.f32 %v1428, %v1428
        %v1665 = vmul.f32 %v1087, %v1087
        %v1666 = vmul.f32 %v1136, %v1136
        %v1667 = vmul.f32 %v1185, %v1185
        %v1668 = vmul.f32 %v1234, %v1234
        %v1669 = vmul.f32 %v1283, %v1283
        %v1670 = vmul.f32 %v1332, %v1332
        %v1671 = vmul.f32 %v1381, %v1381
        %v1672 = vmul.f32 %v1430, %v1430
        %v1673 = vmul.f32 %v1090, %v1090
        %v1674 = vmul.f32 %v1139, %v1139
        %v1675 = vmul.f32 %v1188, %v1188
        %v1676 = vmul.f32 %v1237, %v1237
        %v1677 = vmul.f32 %v1286, %v1286
        %v1678 = vmul.f32 %v1335, %v1335
        %v1679 = vmul.f32 %v1384, %v1384
        %v1680 = vmul.f32 %v1433, %v1433
        %v1681 = vmul.f32 %v1092, %v1092
        %v1682 = vmul.f32 %v1141, %v1141
        %v1683 = vmul.f32 %v1190, %v1190
        %v1684 = vmul.f32 %v1239, %v1239
        %v1685 = vmul.f32 %v1288, %v1288
        %v1686 = vmul.f32 %v1337, %v1337
        %v1687 = vmul.f32 %v1386, %v1386
        %v1688 = vmul.f32 %v1435, %v1435
        %v1689 = vmul.f32 %v1095, %v1095
        %v1690 = vmul.f32 %v1144, %v1144
        %v1691 = vmul.f32 %v1193, %v1193
        %v1692 = vmul.f32 %v1242, %v1242
        %v1693 = vmul.f32 %v1291, %v1291
        %v1694 = vmul.f32 %v1340, %v1340
        %v1695 = vmul.f32 %v1389, %v1389
        %v1696 = vmul.f32 %v1438, %v1438
        %v1697 = vmul.f32 %v1097, %v1097
        %v1698 = vmul.f32 %v1146, %v1146
        %v1699 = vmul.f32 %v1195, %v1195
        %v1700 = vmul.f32 %v1244, %v1244
        %v1701 = vmul.f32 %v1293, %v1293
        %v1702 = vmul.f32 %v1342, %v1342
        %v1703 = vmul.f32 %v1391, %v1391
        %v1704 = vmul.f32 %v1440, %v1440
        %v1705 = vmul.f32 %v1100, %v1100
        %v1706 = vmul.f32 %v1149, %v1149
        %v1707 = vmul.f32 %v1198, %v1198
        %v1708 = vmul.f32 %v1247, %v1247
        %v1709 = vmul.f32 %v1296, %v1296
        %v1710 = vmul.f32 %v1345, %v1345
        %v1711 = vmul.f32 %v1394, %v1394
        %v1712 = vmul.f32 %v1443, %v1443
        %v1713 = vmul.f32 %v1102, %v1102
        %v1714 = vmul.f32 %v1151, %v1151
        %v1715 = vmul.f32 %v1200, %v1200
        %v1716 = vmul.f32 %v1249, %v1249
        %v1717 = vmul.f32 %v1298, %v1298
        %v1718 = vmul.f32 %v1347, %v1347
        %v1719 = vmul.f32 %v1396, %v1396
        %v1720 = vmul.f32 %v1445, %v1445
        %v1721 = vmul.f32 %v1105, %v1105
        %v1722 = vmul.f32 %v1154, %v1154
        %v1723 = vmul.f32 %v1203, %v1203
        %v1724 = vmul.f32 %v1252, %v1252
        %v1725 = vmul.f32 %v1301, %v1301
        %v1726 = vmul.f32 %v1350, %v1350
        %v1727 = vmul.f32 %v1399, %v1399
        %v1728 = vmul.f32 %v1448, %v1448
        %v1729 = vmul.f32 %v1107, %v1107
        %v1730 = vmul.f32 %v1156, %v1156
        %v1731 = vmul.f32 %v1205, %v1205
        %v1732 = vmul.f32 %v1254, %v1254
        %v1733 = vmul.f32 %v1303, %v1303
        %v1734 = vmul.f32 %v1352, %v1352
        %v1735 = vmul.f32 %v1401, %v1401
        %v1736 = vmul.f32 %v1450, %v1450
        %v1737 = vmul.f32 %v1110, %v1110
        %v1738 = vmul.f32 %v1159, %v1159
        %v1739 = vmul.f32 %v1208, %v1208
        %v1740 = vmul.f32 %v1257, %v1257
        %v1741 = vmul.f32 %v1306, %v1306
        %v1742 = vmul.f32 %v1355, %v1355
        %v1743 = vmul.f32 %v1404, %v1404
        %v1744 = vmul.f32 %v1453, %v1453
        %v1745 = vmul.f32 %v1112, %v1112
        %v1746 = vmul.f32 %v1161, %v1161
        %v1747 = vmul.f32 %v1210, %v1210
        %v1748 = vmul.f32 %v1259, %v1259
        %v1749 = vmul.f32 %v1308, %v1308
        %v1750 = vmul.f32 %v1357, %v1357
        %v1751 = vmul.f32 %v1406, %v1406
        %v1752 = vmul.f32 %v1455, %v1455
        %v1753 = vadd.f32 %v1625, %v1633
        %v1754 = vadd.f32 %v1753, %v1641
        %v1755 = vadd.f32 %v1754, %v1649
        %v1756 = vadd.f32 %v1755, %v1657
        %v1757 = vadd.f32 %v1756, %v1665
        %v1758 = vadd.f32 %v1757, %v1673
        %v1759 = vadd.f32 %v1758, %v1681
        %v1760 = vadd.f32 %v1759, %v1689
        %v1761 = vadd.f32 %v1760, %v1697
        %v1762 = vadd.f32 %v1761, %v1705
        %v1763 = vadd.f32 %v1762, %v1713
        %v1764 = vadd.f32 %v1763, %v1721
        %v1765 = vadd.f32 %v1764, %v1729
        %v1766 = vadd.f32 %v1765, %v1737
        %v1767 = vadd.f32 %v1766, %v1745
        %v1768 = vrot.slane %v1767, 4
        %v1769 = vadd.f32 %v1767, %v1768
        %v1770 = vrot.slane %v1769, 2
        %v1771 = vadd.f32 %v1769, %v1770
        %v1772 = vrot.slane %v1771, 1
        %v1773 = vadd.f32 %v1771, %v1772
        %v1774 = vadd.f32 %v1626, %v1634
        %v1775 = vadd.f32 %v1774, %v1642
        %v1776 = vadd.f32 %v1775, %v1650
        %v1777 = vadd.f32 %v1776, %v1658
        %v1778 = vadd.f32 %v1777, %v1666
        %v1779 = vadd.f32 %v1778, %v1674
        %v1780 = vadd.f32 %v1779, %v1682
        %v1781 = vadd.f32 %v1780, %v1690
        %v1782 = vadd.f32 %v1781, %v1698
        %v1783 = vadd.f32 %v1782, %v1706
        %v1784 = vadd.f32 %v1783, %v1714
        %v1785 = vadd.f32 %v1784, %v1722
        %v1786 = vadd.f32 %v1785, %v1730
        %v1787 = vadd.f32 %v1786, %v1738
        %v1788 = vadd.f32 %v1787, %v1746
        %v1789 = vrot.slane %v1788, 4
        %v1790 = vadd.f32 %v1788, %v1789
        %v1791 = vrot.slane %v1790, 2
        %v1792 = vadd.f32 %v1790, %v1791
        %v1793 = vrot.slane %v1792, 1
        %v1794 = vadd.f32 %v1792, %v1793
        %v1795 = vadd.f32 %v1627, %v1635
        %v1796 = vadd.f32 %v1795, %v1643
        %v1797 = vadd.f32 %v1796, %v1651
        %v1798 = vadd.f32 %v1797, %v1659
        %v1799 = vadd.f32 %v1798, %v1667
        %v1800 = vadd.f32 %v1799, %v1675
        %v1801 = vadd.f32 %v1800, %v1683
        %v1802 = vadd.f32 %v1801, %v1691
        %v1803 = vadd.f32 %v1802, %v1699
        %v1804 = vadd.f32 %v1803, %v1707
        %v1805 = vadd.f32 %v1804, %v1715
        %v1806 = vadd.f32 %v1805, %v1723
        %v1807 = vadd.f32 %v1806, %v1731
        %v1808 = vadd.f32 %v1807, %v1739
        %v1809 = vadd.f32 %v1808, %v1747
        %v1810 = vrot.slane %v1809, 4
        %v1811 = vadd.f32 %v1809, %v1810
        %v1812 = vrot.slane %v1811, 2
        %v1813 = vadd.f32 %v1811, %v1812
        %v1814 = vrot.slane %v1813, 1
        %v1815 = vadd.f32 %v1813, %v1814
        %v1816 = vadd.f32 %v1628, %v1636
        %v1817 = vadd.f32 %v1816, %v1644
        %v1818 = vadd.f32 %v1817, %v1652
        %v1819 = vadd.f32 %v1818, %v1660
        %v1820 = vadd.f32 %v1819, %v1668
        %v1821 = vadd.f32 %v1820, %v1676
        %v1822 = vadd.f32 %v1821, %v1684
        %v1823 = vadd.f32 %v1822, %v1692
        %v1824 = vadd.f32 %v1823, %v1700
        %v1825 = vadd.f32 %v1824, %v1708
        %v1826 = vadd.f32 %v1825, %v1716
        %v1827 = vadd.f32 %v1826, %v1724
        %v1828 = vadd.f32 %v1827, %v1732
        %v1829 = vadd.f32 %v1828, %v1740
        %v1830 = vadd.f32 %v1829, %v1748
        %v1831 = vrot.slane %v1830, 4
        %v1832 = vadd.f32 %v1830, %v1831
        %v1833 = vrot.slane %v1832, 2
        %v1834 = vadd.f32 %v1832, %v1833
        %v1835 = vrot.slane %v1834, 1
        %v1836 = vadd.f32 %v1834, %v1835
        %v1837 = vadd.f32 %v1629, %v1637
        %v1838 = vadd.f32 %v1837, %v1645
        %v1839 = vadd.f32 %v1838, %v1653
        %v1840 = vadd.f32 %v1839, %v1661
        %v1841 = vadd.f32 %v1840, %v1669
        %v1842 = vadd.f32 %v1841, %v1677
        %v1843 = vadd.f32 %v1842, %v1685
        %v1844 = vadd.f32 %v1843, %v1693
        %v1845 = vadd.f32 %v1844, %v1701
        %v1846 = vadd.f32 %v1845, %v1709
        %v1847 = vadd.f32 %v1846, %v1717
        %v1848 = vadd.f32 %v1847, %v1725
        %v1849 = vadd.f32 %v1848, %v1733
        %v1850 = vadd.f32 %v1849, %v1741
        %v1851 = vadd.f32 %v1850, %v1749
        %v1852 = vrot.slane %v1851, 4
        %v1853 = vadd.f32 %v1851, %v1852
        %v1854 = vrot.slane %v1853, 2
        %v1855 = vadd.f32 %v1853, %v1854
        %v1856 = vrot.slane %v1855, 1
        %v1857 = vadd.f32 %v1855, %v1856
        %v1858 = vadd.f32 %v1630, %v1638
        %v1859 = vadd.f32 %v1858, %v1646
        %v1860 = vadd.f32 %v1859, %v1654
        %v1861 = vadd.f32 %v1860, %v1662
        %v1862 = vadd.f32 %v1861, %v1670
        %v1863 = vadd.f32 %v1862, %v1678
        %v1864 = vadd.f32 %v1863, %v1686
        %v1865 = vadd.f32 %v1864, %v1694
        %v1866 = vadd.f32 %v1865, %v1702
        %v1867 = vadd.f32 %v1866, %v1710
        %v1868 = vadd.f32 %v1867, %v1718
        %v1869 = vadd.f32 %v1868, %v1726
        %v1870 = vadd.f32 %v1869, %v1734
        %v1871 = vadd.f32 %v1870, %v1742
        %v1872 = vadd.f32 %v1871, %v1750
        %v1873 = vrot.slane %v1872, 4
        %v1874 = vadd.f32 %v1872, %v1873
        %v1875 = vrot.slane %v1874, 2
        %v1876 = vadd.f32 %v1874, %v1875
        %v1877 = vrot.slane %v1876, 1
        %v1878 = vadd.f32 %v1876, %v1877
        %v1879 = vadd.f32 %v1631, %v1639
        %v1880 = vadd.f32 %v1879, %v1647
        %v1881 = vadd.f32 %v1880, %v1655
        %v1882 = vadd.f32 %v1881, %v1663
        %v1883 = vadd.f32 %v1882, %v1671
        %v1884 = vadd.f32 %v1883, %v1679
        %v1885 = vadd.f32 %v1884, %v1687
        %v1886 = vadd.f32 %v1885, %v1695
        %v1887 = vadd.f32 %v1886, %v1703
        %v1888 = vadd.f32 %v1887, %v1711
        %v1889 = vadd.f32 %v1888, %v1719
        %v1890 = vadd.f32 %v1889, %v1727
        %v1891 = vadd.f32 %v1890, %v1735
        %v1892 = vadd.f32 %v1891, %v1743
        %v1893 = vadd.f32 %v1892, %v1751
        %v1894 = vrot.slane %v1893, 4
        %v1895 = vadd.f32 %v1893, %v1894
        %v1896 = vrot.slane %v1895, 2
        %v1897 = vadd.f32 %v1895, %v1896
        %v1898 = vrot.slane %v1897, 1
        %v1899 = vadd.f32 %v1897, %v1898
        %v1900 = vadd.f32 %v1632, %v1640
        %v1901 = vadd.f32 %v1900, %v1648
        %v1902 = vadd.f32 %v1901, %v1656
        %v1903 = vadd.f32 %v1902, %v1664
        %v1904 = vadd.f32 %v1903, %v1672
        %v1905 = vadd.f32 %v1904, %v1680
        %v1906 = vadd.f32 %v1905, %v1688
        %v1907 = vadd.f32 %v1906, %v1696
        %v1908 = vadd.f32 %v1907, %v1704
        %v1909 = vadd.f32 %v1908, %v1712
        %v1910 = vadd.f32 %v1909, %v1720
        %v1911 = vadd.f32 %v1910, %v1728
        %v1912 = vadd.f32 %v1911, %v1736
        %v1913 = vadd.f32 %v1912, %v1744
        %v1914 = vadd.f32 %v1913, %v1752
        %v1915 = vrot.slane %v1914, 4
        %v1916 = vadd.f32 %v1914, %v1915
        %v1917 = vrot.slane %v1916, 2
        %v1918 = vadd.f32 %v1916, %v1917
        %v1919 = vrot.slane %v1918, 1
        %v1920 = vadd.f32 %v1918, %v1919
        %v1921 = vadd.f32 %v1477, %v1561
        %v1922 = vadd.f32 %v1498, %v1582
        %v1923 = vadd.f32 %v1519, %v1603
        %v1924 = vadd.f32 %v1540, %v1624
        %v1925 = vadd.f32 %v1773, %v1857
        %v1926 = vadd.f32 %v1794, %v1878
        %v1927 = vadd.f32 %v1815, %v1899
        %v1928 = vadd.f32 %v1836, %v1920
        %v1929 = vadd.f32 %v1921, %v1923
        %v1930 = vadd.f32 %v1922, %v1924
        %v1931 = vadd.f32 %v1925, %v1927
        %v1932 = vadd.f32 %v1926, %v1928
        %v1933 = vadd.f32 %v1929, %v1930
        %v1934 = vadd.f32 %v1931, %v1932
        %1935 = vrot.lane.b32.xlu0 %v1933, 64
        %v1936 = vpop.permute.xlu0 %1935
        %v1937 = vlaneseq
        %v1938 = vand.u32 %v1937, 127
        %v1939 = vadd.f32 %v1933, %v1936
        %1940 = vrot.lane.b32.xlu0 %v1934, 64
        %v1941 = vpop.permute.xlu0 %1940
        %v1942 = vadd.f32 %v1934, %v1941
        %v1943 = vmul.f32 %v1939, 0.00048828125
        %v1944 = vmul.f32 %v1942, 0.00048828125
        %v1945 = vmul.f32 %v1943, %v1943
        %v1946 = vsub.f32 %v1944, %v1945
        %v1947 = vld [vmem:[%s344] sm:$0xff]
        %v1948 = vadd.f32 %v1946, 1e-05
        %v1949 = vrsqrt.pop %v1948
        %v1950 = vmul.f32 %v1949, %v1948
        %v1951 = vmul.f32 %v1950, %v1949
        %v1952 = vmul.f32 0.5, %v1951
        %v1953 = vsub.f32 1.5, %v1952
        %v1954 = vmul.f32 %v1949, %v1953
        %vm1955 = vweird.f32 %v1948
        %vm1956 = vweird.f32 %v1949
        %vm1957 = vmor %vm1955, %vm1956
        %v1958 = vsel %vm1957, %v1949, %v1954
        %v1960 = vrot.slane %v1958, 7
        %v1961 = vrot.slane %v1958, 6
        %v1962 = vrot.slane %v1958, 5
        %v1963 = vrot.slane %v1958, 4
        %v1964 = vrot.slane %v1958, 3
        %v1965 = vrot.slane %v1958, 2
        %v1966 = vrot.slane %v1958, 1
        %vm1967 = vcmask 1040384
        %v1968 = vsel %vm1967, %v1958, %v1960
        %vm1969 = vcmask 1042434
        %v1970 = vsel %vm1969, %v1961, %v1962
        %vm1971 = vcmask 1041408
        %v1972 = vsel %vm1971, %v1968, %v1970
        %vm1973 = vcmask 1044484
        %v1974 = vsel %vm1973, %v1963, %v1964
        %vm1975 = vcmask 1046534
        %v1976 = vsel %vm1975, %v1965, %v1966
        %vm1977 = vcmask 1045508
        %v1978 = vsel %vm1977, %v1974, %v1976
        %vm1979 = vcmask 1043456
        %v1980 = vsel %vm1979, %v1972, %v1978
        %v1982 = vmul.f32 %v1947, %v1980
        %v1983 = vld [vmem:[%s349] sm:$0xff]
        %v1985 = vperm.slane %v1982, 0
        %v1986 = vperm.slane %v1982, 1
        %v1987 = vperm.slane %v1982, 2
        %v1988 = vperm.slane %v1982, 3
        %v1989 = vperm.slane %v1982, 4
        %v1990 = vperm.slane %v1982, 5
        %v1991 = vperm.slane %v1982, 6
        %v1992 = vperm.slane %v1982, 7
        %v2001 = vmul.f32 %v1943, %v1985
        %v2002 = vmul.f32 %v1943, %v1986
        %v2003 = vmul.f32 %v1943, %v1987
        %v2004 = vmul.f32 %v1943, %v1988
        %v2005 = vmul.f32 %v1943, %v1989
        %v2006 = vmul.f32 %v1943, %v1990
        %v2007 = vmul.f32 %v1943, %v1991
        %v2008 = vmul.f32 %v1943, %v1992
        %v2017 = vrot.slane %v2002, 7
        %v2018 = vrot.slane %v2003, 6
        %v2019 = vrot.slane %v2004, 5
        %v2020 = vrot.slane %v2005, 4
        %v2021 = vrot.slane %v2006, 3
        %v2022 = vrot.slane %v2007, 2
        %v2023 = vrot.slane %v2008, 1
        %v2024 = vsel %vm1967, %v2001, %v2017
        %v2025 = vsel %vm1969, %v2018, %v2019
        %v2026 = vsel %vm1971, %v2024, %v2025
        %v2027 = vsel %vm1973, %v2020, %v2021
        %v2028 = vsel %vm1975, %v2022, %v2023
        %v2029 = vsel %vm1977, %v2027, %v2028
        %v2030 = vsel %vm1979, %v2026, %v2029
        %v2032 = vsub.f32 %v1983, %v2030
        %v2033 = vmul.f32 %v1075, %v1985
        %v2034 = vmul.f32 %v1124, %v1986
        %v2035 = vmul.f32 %v1173, %v1987
        %v2036 = vmul.f32 %v1222, %v1988
        %v2037 = vmul.f32 %v1271, %v1989
        %v2038 = vmul.f32 %v1320, %v1990
        %v2039 = vmul.f32 %v1369, %v1991
        %v2040 = vmul.f32 %v1418, %v1992
        %v2041 = vmul.f32 %v1077, %v1985
        %v2042 = vmul.f32 %v1126, %v1986
        %v2043 = vmul.f32 %v1175, %v1987
        %v2044 = vmul.f32 %v1224, %v1988
        %v2045 = vmul.f32 %v1273, %v1989
        %v2046 = vmul.f32 %v1322, %v1990
        %v2047 = vmul.f32 %v1371, %v1991
        %v2048 = vmul.f32 %v1420, %v1992
        %v2049 = vmul.f32 %v1080, %v1985
        %v2050 = vmul.f32 %v1129, %v1986
        %v2051 = vmul.f32 %v1178, %v1987
        %v2052 = vmul.f32 %v1227, %v1988
        %v2053 = vmul.f32 %v1276, %v1989
        %v2054 = vmul.f32 %v1325, %v1990
        %v2055 = vmul.f32 %v1374, %v1991
        %v2056 = vmul.f32 %v1423, %v1992
        %v2057 = vmul.f32 %v1082, %v1985
        %v2058 = vmul.f32 %v1131, %v1986
        %v2059 = vmul.f32 %v1180, %v1987
        %v2060 = vmul.f32 %v1229, %v1988
        %v2061 = vmul.f32 %v1278, %v1989
        %v2062 = vmul.f32 %v1327, %v1990
        %v2063 = vmul.f32 %v1376, %v1991
        %v2064 = vmul.f32 %v1425, %v1992
        %v2065 = vmul.f32 %v1085, %v1985
        %v2066 = vmul.f32 %v1134, %v1986
        %v2067 = vmul.f32 %v1183, %v1987
        %v2068 = vmul.f32 %v1232, %v1988
        %v2069 = vmul.f32 %v1281, %v1989
        %v2070 = vmul.f32 %v1330, %v1990
        %v2071 = vmul.f32 %v1379, %v1991
        %v2072 = vmul.f32 %v1428, %v1992
        %v2073 = vmul.f32 %v1087, %v1985
        %v2074 = vmul.f32 %v1136, %v1986
        %v2075 = vmul.f32 %v1185, %v1987
        %v2076 = vmul.f32 %v1234, %v1988
        %v2077 = vmul.f32 %v1283, %v1989
        %v2078 = vmul.f32 %v1332, %v1990
        %v2079 = vmul.f32 %v1381, %v1991
        %v2080 = vmul.f32 %v1430, %v1992
        %v2081 = vmul.f32 %v1090, %v1985
        %v2082 = vmul.f32 %v1139, %v1986
        %v2083 = vmul.f32 %v1188, %v1987
        %v2084 = vmul.f32 %v1237, %v1988
        %v2085 = vmul.f32 %v1286, %v1989
        %v2086 = vmul.f32 %v1335, %v1990
        %v2087 = vmul.f32 %v1384, %v1991
        %v2088 = vmul.f32 %v1433, %v1992
        %v2089 = vmul.f32 %v1092, %v1985
        %v2090 = vmul.f32 %v1141, %v1986
        %v2091 = vmul.f32 %v1190, %v1987
        %v2092 = vmul.f32 %v1239, %v1988
        %v2093 = vmul.f32 %v1288, %v1989
        %v2094 = vmul.f32 %v1337, %v1990
        %v2095 = vmul.f32 %v1386, %v1991
        %v2096 = vmul.f32 %v1435, %v1992
        %v2097 = vmul.f32 %v1095, %v1985
        %v2098 = vmul.f32 %v1144, %v1986
        %v2099 = vmul.f32 %v1193, %v1987
        %v2100 = vmul.f32 %v1242, %v1988
        %v2101 = vmul.f32 %v1291, %v1989
        %v2102 = vmul.f32 %v1340, %v1990
        %v2103 = vmul.f32 %v1389, %v1991
        %v2104 = vmul.f32 %v1438, %v1992
        %v2105 = vmul.f32 %v1097, %v1985
        %v2106 = vmul.f32 %v1146, %v1986
        %v2107 = vmul.f32 %v1195, %v1987
        %v2108 = vmul.f32 %v1244, %v1988
        %v2109 = vmul.f32 %v1293, %v1989
        %v2110 = vmul.f32 %v1342, %v1990
        %v2111 = vmul.f32 %v1391, %v1991
        %v2112 = vmul.f32 %v1440, %v1992
        %v2113 = vmul.f32 %v1100, %v1985
        %v2114 = vmul.f32 %v1149, %v1986
        %v2115 = vmul.f32 %v1198, %v1987
        %v2116 = vmul.f32 %v1247, %v1988
        %v2117 = vmul.f32 %v1296, %v1989
        %v2118 = vmul.f32 %v1345, %v1990
        %v2119 = vmul.f32 %v1394, %v1991
        %v2120 = vmul.f32 %v1443, %v1992
        %v2121 = vmul.f32 %v1102, %v1985
        %v2122 = vmul.f32 %v1151, %v1986
        %v2123 = vmul.f32 %v1200, %v1987
        %v2124 = vmul.f32 %v1249, %v1988
        %v2125 = vmul.f32 %v1298, %v1989
        %v2126 = vmul.f32 %v1347, %v1990
        %v2127 = vmul.f32 %v1396, %v1991
        %v2128 = vmul.f32 %v1445, %v1992
        %v2129 = vmul.f32 %v1105, %v1985
        %v2130 = vmul.f32 %v1154, %v1986
        %v2131 = vmul.f32 %v1203, %v1987
        %v2132 = vmul.f32 %v1252, %v1988
        %v2133 = vmul.f32 %v1301, %v1989
        %v2134 = vmul.f32 %v1350, %v1990
        %v2135 = vmul.f32 %v1399, %v1991
        %v2136 = vmul.f32 %v1448, %v1992
        %v2137 = vmul.f32 %v1107, %v1985
        %v2138 = vmul.f32 %v1156, %v1986
        %v2139 = vmul.f32 %v1205, %v1987
        %v2140 = vmul.f32 %v1254, %v1988
        %v2141 = vmul.f32 %v1303, %v1989
        %v2142 = vmul.f32 %v1352, %v1990
        %v2143 = vmul.f32 %v1401, %v1991
        %v2144 = vmul.f32 %v1450, %v1992
        %v2145 = vmul.f32 %v1110, %v1985
        %v2146 = vmul.f32 %v1159, %v1986
        %v2147 = vmul.f32 %v1208, %v1987
        %v2148 = vmul.f32 %v1257, %v1988
        %v2149 = vmul.f32 %v1306, %v1989
        %v2150 = vmul.f32 %v1355, %v1990
        %v2151 = vmul.f32 %v1404, %v1991
        %v2152 = vmul.f32 %v1453, %v1992
        %v2153 = vmul.f32 %v1112, %v1985
        %v2154 = vmul.f32 %v1161, %v1986
        %v2155 = vmul.f32 %v1210, %v1987
        %v2156 = vmul.f32 %v1259, %v1988
        %v2157 = vmul.f32 %v1308, %v1989
        %v2158 = vmul.f32 %v1357, %v1990
        %v2159 = vmul.f32 %v1406, %v1991
        %v2160 = vmul.f32 %v1455, %v1992
        %v2162 = vperm.slane %v2032, 0
        %v2163 = vperm.slane %v2032, 1
        %v2164 = vperm.slane %v2032, 2
        %v2165 = vperm.slane %v2032, 3
        %v2166 = vperm.slane %v2032, 4
        %v2167 = vperm.slane %v2032, 5
        %v2168 = vperm.slane %v2032, 6
        %v2169 = vperm.slane %v2032, 7
        %v2178 = vadd.f32 %v2033, %v2162
        %v2179 = vadd.f32 %v2034, %v2163
        %v2180 = vadd.f32 %v2035, %v2164
        %v2181 = vadd.f32 %v2036, %v2165
        %v2182 = vadd.f32 %v2037, %v2166
        %v2183 = vadd.f32 %v2038, %v2167
        %v2184 = vadd.f32 %v2039, %v2168
        %v2185 = vadd.f32 %v2040, %v2169
        %v2186 = vadd.f32 %v2041, %v2162
        %v2187 = vadd.f32 %v2042, %v2163
        %v2188 = vadd.f32 %v2043, %v2164
        %v2189 = vadd.f32 %v2044, %v2165
        %v2190 = vadd.f32 %v2045, %v2166
        %v2191 = vadd.f32 %v2046, %v2167
        %v2192 = vadd.f32 %v2047, %v2168
        %v2193 = vadd.f32 %v2048, %v2169
        %v2194 = vadd.f32 %v2049, %v2162
        %v2195 = vadd.f32 %v2050, %v2163
        %v2196 = vadd.f32 %v2051, %v2164
        %v2197 = vadd.f32 %v2052, %v2165
        %v2198 = vadd.f32 %v2053, %v2166
        %v2199 = vadd.f32 %v2054, %v2167
        %v2200 = vadd.f32 %v2055, %v2168
        %v2201 = vadd.f32 %v2056, %v2169
        %v2202 = vadd.f32 %v2057, %v2162
        %v2203 = vadd.f32 %v2058, %v2163
        %v2204 = vadd.f32 %v2059, %v2164
        %v2205 = vadd.f32 %v2060, %v2165
        %v2206 = vadd.f32 %v2061, %v2166
        %v2207 = vadd.f32 %v2062, %v2167
        %v2208 = vadd.f32 %v2063, %v2168
        %v2209 = vadd.f32 %v2064, %v2169
        %v2210 = vadd.f32 %v2065, %v2162
        %v2211 = vadd.f32 %v2066, %v2163
        %v2212 = vadd.f32 %v2067, %v2164
        %v2213 = vadd.f32 %v2068, %v2165
        %v2214 = vadd.f32 %v2069, %v2166
        %v2215 = vadd.f32 %v2070, %v2167
        %v2216 = vadd.f32 %v2071, %v2168
        %v2217 = vadd.f32 %v2072, %v2169
        %v2218 = vadd.f32 %v2073, %v2162
        %v2219 = vadd.f32 %v2074, %v2163
        %v2220 = vadd.f32 %v2075, %v2164
        %v2221 = vadd.f32 %v2076, %v2165
        %v2222 = vadd.f32 %v2077, %v2166
        %v2223 = vadd.f32 %v2078, %v2167
        %v2224 = vadd.f32 %v2079, %v2168
        %v2225 = vadd.f32 %v2080, %v2169
        %v2226 = vadd.f32 %v2081, %v2162
        %v2227 = vadd.f32 %v2082, %v2163
        %v2228 = vadd.f32 %v2083, %v2164
        %v2229 = vadd.f32 %v2084, %v2165
        %v2230 = vadd.f32 %v2085, %v2166
        %v2231 = vadd.f32 %v2086, %v2167
        %v2232 = vadd.f32 %v2087, %v2168
        %v2233 = vadd.f32 %v2088, %v2169
        %v2234 = vadd.f32 %v2089, %v2162
        %v2235 = vadd.f32 %v2090, %v2163
        %v2236 = vadd.f32 %v2091, %v2164
        %v2237 = vadd.f32 %v2092, %v2165
        %v2238 = vadd.f32 %v2093, %v2166
        %v2239 = vadd.f32 %v2094, %v2167
        %v2240 = vadd.f32 %v2095, %v2168
        %v2241 = vadd.f32 %v2096, %v2169
        %v2242 = vadd.f32 %v2097, %v2162
        %v2243 = vadd.f32 %v2098, %v2163
        %v2244 = vadd.f32 %v2099, %v2164
        %v2245 = vadd.f32 %v2100, %v2165
        %v2246 = vadd.f32 %v2101, %v2166
        %v2247 = vadd.f32 %v2102, %v2167
        %v2248 = vadd.f32 %v2103, %v2168
        %v2249 = vadd.f32 %v2104, %v2169
        %v2250 = vadd.f32 %v2105, %v2162
        %v2251 = vadd.f32 %v2106, %v2163
        %v2252 = vadd.f32 %v2107, %v2164
        %v2253 = vadd.f32 %v2108, %v2165
        %v2254 = vadd.f32 %v2109, %v2166
        %v2255 = vadd.f32 %v2110, %v2167
        %v2256 = vadd.f32 %v2111, %v2168
        %v2257 = vadd.f32 %v2112, %v2169
        %v2258 = vadd.f32 %v2113, %v2162
        %v2259 = vadd.f32 %v2114, %v2163
        %v2260 = vadd.f32 %v2115, %v2164
        %v2261 = vadd.f32 %v2116, %v2165
        %v2262 = vadd.f32 %v2117, %v2166
        %v2263 = vadd.f32 %v2118, %v2167
        %v2264 = vadd.f32 %v2119, %v2168
        %v2265 = vadd.f32 %v2120, %v2169
        %v2266 = vadd.f32 %v2121, %v2162
        %v2267 = vadd.f32 %v2122, %v2163
        %v2268 = vadd.f32 %v2123, %v2164
        %v2269 = vadd.f32 %v2124, %v2165
        %v2270 = vadd.f32 %v2125, %v2166
        %v2271 = vadd.f32 %v2126, %v2167
        %v2272 = vadd.f32 %v2127, %v2168
        %v2273 = vadd.f32 %v2128, %v2169
        %v2274 = vadd.f32 %v2129, %v2162
        %v2275 = vadd.f32 %v2130, %v2163
        %v2276 = vadd.f32 %v2131, %v2164
        %v2277 = vadd.f32 %v2132, %v2165
        %v2278 = vadd.f32 %v2133, %v2166
        %v2279 = vadd.f32 %v2134, %v2167
        %v2280 = vadd.f32 %v2135, %v2168
        %v2281 = vadd.f32 %v2136, %v2169
        %v2282 = vadd.f32 %v2137, %v2162
        %v2283 = vadd.f32 %v2138, %v2163
        %v2284 = vadd.f32 %v2139, %v2164
        %v2285 = vadd.f32 %v2140, %v2165
        %v2286 = vadd.f32 %v2141, %v2166
        %v2287 = vadd.f32 %v2142, %v2167
        %v2288 = vadd.f32 %v2143, %v2168
        %v2289 = vadd.f32 %v2144, %v2169
        %v2290 = vadd.f32 %v2145, %v2162
        %v2291 = vadd.f32 %v2146, %v2163
        %v2292 = vadd.f32 %v2147, %v2164
        %v2293 = vadd.f32 %v2148, %v2165
        %v2294 = vadd.f32 %v2149, %v2166
        %v2295 = vadd.f32 %v2150, %v2167
        %v2296 = vadd.f32 %v2151, %v2168
        %v2297 = vadd.f32 %v2152, %v2169
        %v2298 = vadd.f32 %v2153, %v2162
        %v2299 = vadd.f32 %v2154, %v2163
        %v2300 = vadd.f32 %v2155, %v2164
        %v2301 = vadd.f32 %v2156, %v2165
        %v2302 = vadd.f32 %v2157, %v2166
        %v2303 = vadd.f32 %v2158, %v2167
        %v2304 = vadd.f32 %v2159, %v2168
        %v2305 = vadd.f32 %v2160, %v2169
        %v2306 = vmax.f32 %v2178, 0.0
        %v2307 = vmax.f32 %v2179, 0.0
        %v2308 = vmax.f32 %v2180, 0.0
        %v2309 = vmax.f32 %v2181, 0.0
        %v2310 = vmax.f32 %v2182, 0.0
        %v2311 = vmax.f32 %v2183, 0.0
        %v2312 = vmax.f32 %v2184, 0.0
        %v2313 = vmax.f32 %v2185, 0.0
        %v2314 = vmax.f32 %v2186, 0.0
        %v2315 = vmax.f32 %v2187, 0.0
        %v2316 = vmax.f32 %v2188, 0.0
        %v2317 = vmax.f32 %v2189, 0.0
        %v2318 = vmax.f32 %v2190, 0.0
        %v2319 = vmax.f32 %v2191, 0.0
        %v2320 = vmax.f32 %v2192, 0.0
        %v2321 = vmax.f32 %v2193, 0.0
        %v2322 = vmax.f32 %v2194, 0.0
        %v2323 = vmax.f32 %v2195, 0.0
        %v2324 = vmax.f32 %v2196, 0.0
        %v2325 = vmax.f32 %v2197, 0.0
        %v2326 = vmax.f32 %v2198, 0.0
        %v2327 = vmax.f32 %v2199, 0.0
        %v2328 = vmax.f32 %v2200, 0.0
        %v2329 = vmax.f32 %v2201, 0.0
        %v2330 = vmax.f32 %v2202, 0.0
        %v2331 = vmax.f32 %v2203, 0.0
        %v2332 = vmax.f32 %v2204, 0.0
        %v2333 = vmax.f32 %v2205, 0.0
        %v2334 = vmax.f32 %v2206, 0.0
        %v2335 = vmax.f32 %v2207, 0.0
        %v2336 = vmax.f32 %v2208, 0.0
        %v2337 = vmax.f32 %v2209, 0.0
        %v2338 = vmax.f32 %v2210, 0.0
        %v2339 = vmax.f32 %v2211, 0.0
        %v2340 = vmax.f32 %v2212, 0.0
        %v2341 = vmax.f32 %v2213, 0.0
        %v2342 = vmax.f32 %v2214, 0.0
        %v2343 = vmax.f32 %v2215, 0.0
        %v2344 = vmax.f32 %v2216, 0.0
        %v2345 = vmax.f32 %v2217, 0.0
        %v2346 = vmax.f32 %v2218, 0.0
        %v2347 = vmax.f32 %v2219, 0.0
        %v2348 = vmax.f32 %v2220, 0.0
        %v2349 = vmax.f32 %v2221, 0.0
        %v2350 = vmax.f32 %v2222, 0.0
        %v2351 = vmax.f32 %v2223, 0.0
        %v2352 = vmax.f32 %v2224, 0.0
        %v2353 = vmax.f32 %v2225, 0.0
        %v2354 = vmax.f32 %v2226, 0.0
        %v2355 = vmax.f32 %v2227, 0.0
        %v2356 = vmax.f32 %v2228, 0.0
        %v2357 = vmax.f32 %v2229, 0.0
        %v2358 = vmax.f32 %v2230, 0.0
        %v2359 = vmax.f32 %v2231, 0.0
        %v2360 = vmax.f32 %v2232, 0.0
        %v2361 = vmax.f32 %v2233, 0.0
        %v2362 = vmax.f32 %v2234, 0.0
        %v2363 = vmax.f32 %v2235, 0.0
        %v2364 = vmax.f32 %v2236, 0.0
        %v2365 = vmax.f32 %v2237, 0.0
        %v2366 = vmax.f32 %v2238, 0.0
        %v2367 = vmax.f32 %v2239, 0.0
        %v2368 = vmax.f32 %v2240, 0.0
        %v2369 = vmax.f32 %v2241, 0.0
        %v2370 = vmax.f32 %v2242, 0.0
        %v2371 = vmax.f32 %v2243, 0.0
        %v2372 = vmax.f32 %v2244, 0.0
        %v2373 = vmax.f32 %v2245, 0.0
        %v2374 = vmax.f32 %v2246, 0.0
        %v2375 = vmax.f32 %v2247, 0.0
        %v2376 = vmax.f32 %v2248, 0.0
        %v2377 = vmax.f32 %v2249, 0.0
        %v2378 = vmax.f32 %v2250, 0.0
        %v2379 = vmax.f32 %v2251, 0.0
        %v2380 = vmax.f32 %v2252, 0.0
        %v2381 = vmax.f32 %v2253, 0.0
        %v2382 = vmax.f32 %v2254, 0.0
        %v2383 = vmax.f32 %v2255, 0.0
        %v2384 = vmax.f32 %v2256, 0.0
        %v2385 = vmax.f32 %v2257, 0.0
        %v2386 = vmax.f32 %v2258, 0.0
        %v2387 = vmax.f32 %v2259, 0.0
        %v2388 = vmax.f32 %v2260, 0.0
        %v2389 = vmax.f32 %v2261, 0.0
        %v2390 = vmax.f32 %v2262, 0.0
        %v2391 = vmax.f32 %v2263, 0.0
        %v2392 = vmax.f32 %v2264, 0.0
        %v2393 = vmax.f32 %v2265, 0.0
        %v2394 = vmax.f32 %v2266, 0.0
        %v2395 = vmax.f32 %v2267, 0.0
        %v2396 = vmax.f32 %v2268, 0.0
        %v2397 = vmax.f32 %v2269, 0.0
        %v2398 = vmax.f32 %v2270, 0.0
        %v2399 = vmax.f32 %v2271, 0.0
        %v2400 = vmax.f32 %v2272, 0.0
        %v2401 = vmax.f32 %v2273, 0.0
        %v2402 = vmax.f32 %v2274, 0.0
        %v2403 = vmax.f32 %v2275, 0.0
        %v2404 = vmax.f32 %v2276, 0.0
        %v2405 = vmax.f32 %v2277, 0.0
        %v2406 = vmax.f32 %v2278, 0.0
        %v2407 = vmax.f32 %v2279, 0.0
        %v2408 = vmax.f32 %v2280, 0.0
        %v2409 = vmax.f32 %v2281, 0.0
        %v2410 = vmax.f32 %v2282, 0.0
        %v2411 = vmax.f32 %v2283, 0.0
        %v2412 = vmax.f32 %v2284, 0.0
        %v2413 = vmax.f32 %v2285, 0.0
        %v2414 = vmax.f32 %v2286, 0.0
        %v2415 = vmax.f32 %v2287, 0.0
        %v2416 = vmax.f32 %v2288, 0.0
        %v2417 = vmax.f32 %v2289, 0.0
        %v2418 = vmax.f32 %v2290, 0.0
        %v2419 = vmax.f32 %v2291, 0.0
        %v2420 = vmax.f32 %v2292, 0.0
        %v2421 = vmax.f32 %v2293, 0.0
        %v2422 = vmax.f32 %v2294, 0.0
        %v2423 = vmax.f32 %v2295, 0.0
        %v2424 = vmax.f32 %v2296, 0.0
        %v2425 = vmax.f32 %v2297, 0.0
        %v2426 = vmax.f32 %v2298, 0.0
        %v2427 = vmax.f32 %v2299, 0.0
        %v2428 = vmax.f32 %v2300, 0.0
        %v2429 = vmax.f32 %v2301, 0.0
        %v2430 = vmax.f32 %v2302, 0.0
        %v2431 = vmax.f32 %v2303, 0.0
        %v2432 = vmax.f32 %v2304, 0.0
        %v2433 = vmax.f32 %v2305, 0.0
        %2434 = vst [vmem:[%s339] sm:$0xff] %v2306
        %2435 = vst [vmem:[%s339 + $0x8] sm:$0xff] %v2307
        %2436 = vst [vmem:[%s339 + $0x10] sm:$0xff] %v2308
        %2437 = vst [vmem:[%s339 + $0x18] sm:$0xff] %v2309
        %2438 = vst [vmem:[%s339 + $0x20] sm:$0xff] %v2310
        %2439 = vst [vmem:[%s339 + $0x28] sm:$0xff] %v2311
        %2440 = vst [vmem:[%s339 + $0x30] sm:$0xff] %v2312
        %2441 = vst [vmem:[%s339 + $0x38] sm:$0xff] %v2313
        %2442 = vst [vmem:[%s339 + $0x40] sm:$0xff] %v2314
        %2443 = vst [vmem:[%s339 + $0x48] sm:$0xff] %v2315
        %2444 = vst [vmem:[%s339 + $0x50] sm:$0xff] %v2316
        %2445 = vst [vmem:[%s339 + $0x58] sm:$0xff] %v2317
        %2446 = vst [vmem:[%s339 + $0x60] sm:$0xff] %v2318
        %2447 = vst [vmem:[%s339 + $0x68] sm:$0xff] %v2319
        %2448 = vst [vmem:[%s339 + $0x70] sm:$0xff] %v2320
        %2449 = vst [vmem:[%s339 + $0x78] sm:$0xff] %v2321
        %2450 = vst [vmem:[%s339 + $0x80] sm:$0xff] %v2322
        %2451 = vst [vmem:[%s339 + $0x88] sm:$0xff] %v2323
        %2452 = vst [vmem:[%s339 + $0x90] sm:$0xff] %v2324
        %2453 = vst [vmem:[%s339 + $0x98] sm:$0xff] %v2325
        %2454 = vst [vmem:[%s339 + $0xa0] sm:$0xff] %v2326
        %2455 = vst [vmem:[%s339 + $0xa8] sm:$0xff] %v2327
        %2456 = vst [vmem:[%s339 + $0xb0] sm:$0xff] %v2328
        %2457 = vst [vmem:[%s339 + $0xb8] sm:$0xff] %v2329
        %2458 = vst [vmem:[%s339 + $0xc0] sm:$0xff] %v2330
        %2459 = vst [vmem:[%s339 + $0xc8] sm:$0xff] %v2331
        %2460 = vst [vmem:[%s339 + $0xd0] sm:$0xff] %v2332
        %2461 = vst [vmem:[%s339 + $0xd8] sm:$0xff] %v2333
        %2462 = vst [vmem:[%s339 + $0xe0] sm:$0xff] %v2334
        %2463 = vst [vmem:[%s339 + $0xe8] sm:$0xff] %v2335
        %2464 = vst [vmem:[%s339 + $0xf0] sm:$0xff] %v2336
        %2465 = vst [vmem:[%s339 + $0xf8] sm:$0xff] %v2337
        %2466 = vst [vmem:[%s339 + $0x100] sm:$0xff] %v2338
        %2467 = vst [vmem:[%s339 + $0x108] sm:$0xff] %v2339
        %2468 = vst [vmem:[%s339 + $0x110] sm:$0xff] %v2340
        %2469 = vst [vmem:[%s339 + $0x118] sm:$0xff] %v2341
        %2470 = vst [vmem:[%s339 + $0x120] sm:$0xff] %v2342
        %2471 = vst [vmem:[%s339 + $0x128] sm:$0xff] %v2343
        %2472 = vst [vmem:[%s339 + $0x130] sm:$0xff] %v2344
        %2473 = vst [vmem:[%s339 + $0x138] sm:$0xff] %v2345
        %2474 = vst [vmem:[%s339 + $0x140] sm:$0xff] %v2346
        %2475 = vst [vmem:[%s339 + $0x148] sm:$0xff] %v2347
        %2476 = vst [vmem:[%s339 + $0x150] sm:$0xff] %v2348
        %2477 = vst [vmem:[%s339 + $0x158] sm:$0xff] %v2349
        %2478 = vst [vmem:[%s339 + $0x160] sm:$0xff] %v2350
        %2479 = vst [vmem:[%s339 + $0x168] sm:$0xff] %v2351
        %2480 = vst [vmem:[%s339 + $0x170] sm:$0xff] %v2352
        %2481 = vst [vmem:[%s339 + $0x178] sm:$0xff] %v2353
        %2482 = vst [vmem:[%s339 + $0x180] sm:$0xff] %v2354
        %2483 = vst [vmem:[%s339 + $0x188] sm:$0xff] %v2355
        %2484 = vst [vmem:[%s339 + $0x190] sm:$0xff] %v2356
        %2485 = vst [vmem:[%s339 + $0x198] sm:$0xff] %v2357
        %2486 = vst [vmem:[%s339 + $0x1a0] sm:$0xff] %v2358
        %2487 = vst [vmem:[%s339 + $0x1a8] sm:$0xff] %v2359
        %2488 = vst [vmem:[%s339 + $0x1b0] sm:$0xff] %v2360
        %2489 = vst [vmem:[%s339 + $0x1b8] sm:$0xff] %v2361
        %2490 = vst [vmem:[%s339 + $0x1c0] sm:$0xff] %v2362
        %2491 = vst [vmem:[%s339 + $0x1c8] sm:$0xff] %v2363
        %2492 = vst [vmem:[%s339 + $0x1d0] sm:$0xff] %v2364
        %2493 = vst [vmem:[%s339 + $0x1d8] sm:$0xff] %v2365
        %2494 = vst [vmem:[%s339 + $0x1e0] sm:$0xff] %v2366
        %2495 = vst [vmem:[%s339 + $0x1e8] sm:$0xff] %v2367
        %2496 = vst [vmem:[%s339 + $0x1f0] sm:$0xff] %v2368
        %2497 = vst [vmem:[%s339 + $0x1f8] sm:$0xff] %v2369
        %2498 = vst [vmem:[%s339 + $0x200] sm:$0xff] %v2370
        %2499 = vst [vmem:[%s339 + $0x208] sm:$0xff] %v2371
        %2500 = vst [vmem:[%s339 + $0x210] sm:$0xff] %v2372
        %2501 = vst [vmem:[%s339 + $0x218] sm:$0xff] %v2373
        %2502 = vst [vmem:[%s339 + $0x220] sm:$0xff] %v2374
        %2503 = vst [vmem:[%s339 + $0x228] sm:$0xff] %v2375
        %2504 = vst [vmem:[%s339 + $0x230] sm:$0xff] %v2376
        %2505 = vst [vmem:[%s339 + $0x238] sm:$0xff] %v2377
        %2506 = vst [vmem:[%s339 + $0x240] sm:$0xff] %v2378
        %2507 = vst [vmem:[%s339 + $0x248] sm:$0xff] %v2379
        %2508 = vst [vmem:[%s339 + $0x250] sm:$0xff] %v2380
        %2509 = vst [vmem:[%s339 + $0x258] sm:$0xff] %v2381
        %2510 = vst [vmem:[%s339 + $0x260] sm:$0xff] %v2382
        %2511 = vst [vmem:[%s339 + $0x268] sm:$0xff] %v2383
        %2512 = vst [vmem:[%s339 + $0x270] sm:$0xff] %v2384
        %2513 = vst [vmem:[%s339 + $0x278] sm:$0xff] %v2385
        %2514 = vst [vmem:[%s339 + $0x280] sm:$0xff] %v2386
        %2515 = vst [vmem:[%s339 + $0x288] sm:$0xff] %v2387
        %2516 = vst [vmem:[%s339 + $0x290] sm:$0xff] %v2388
        %2517 = vst [vmem:[%s339 + $0x298] sm:$0xff] %v2389
        %2518 = vst [vmem:[%s339 + $0x2a0] sm:$0xff] %v2390
        %2519 = vst [vmem:[%s339 + $0x2a8] sm:$0xff] %v2391
        %2520 = vst [vmem:[%s339 + $0x2b0] sm:$0xff] %v2392
        %2521 = vst [vmem:[%s339 + $0x2b8] sm:$0xff] %v2393
        %2522 = vst [vmem:[%s339 + $0x2c0] sm:$0xff] %v2394
        %2523 = vst [vmem:[%s339 + $0x2c8] sm:$0xff] %v2395
        %2524 = vst [vmem:[%s339 + $0x2d0] sm:$0xff] %v2396
        %2525 = vst [vmem:[%s339 + $0x2d8] sm:$0xff] %v2397
        %2526 = vst [vmem:[%s339 + $0x2e0] sm:$0xff] %v2398
        %2527 = vst [vmem:[%s339 + $0x2e8] sm:$0xff] %v2399
        %2528 = vst [vmem:[%s339 + $0x2f0] sm:$0xff] %v2400
        %2529 = vst [vmem:[%s339 + $0x2f8] sm:$0xff] %v2401
        %2530 = vst [vmem:[%s339 + $0x300] sm:$0xff] %v2402
        %2531 = vst [vmem:[%s339 + $0x308] sm:$0xff] %v2403
        %2532 = vst [vmem:[%s339 + $0x310] sm:$0xff] %v2404
        %2533 = vst [vmem:[%s339 + $0x318] sm:$0xff] %v2405
        %2534 = vst [vmem:[%s339 + $0x320] sm:$0xff] %v2406
        %2535 = vst [vmem:[%s339 + $0x328] sm:$0xff] %v2407
        %2536 = vst [vmem:[%s339 + $0x330] sm:$0xff] %v2408
        %2537 = vst [vmem:[%s339 + $0x338] sm:$0xff] %v2409
        %2538 = vst [vmem:[%s339 + $0x340] sm:$0xff] %v2410
        %2539 = vst [vmem:[%s339 + $0x348] sm:$0xff] %v2411
        %2540 = vst [vmem:[%s339 + $0x350] sm:$0xff] %v2412
        %2541 = vst [vmem:[%s339 + $0x358] sm:$0xff] %v2413
        %2542 = vst [vmem:[%s339 + $0x360] sm:$0xff] %v2414
        %2543 = vst [vmem:[%s339 + $0x368] sm:$0xff] %v2415
        %2544 = vst [vmem:[%s339 + $0x370] sm:$0xff] %v2416
        %2545 = vst [vmem:[%s339 + $0x378] sm:$0xff] %v2417
        %2546 = vst [vmem:[%s339 + $0x380] sm:$0xff] %v2418
        %2547 = vst [vmem:[%s339 + $0x388] sm:$0xff] %v2419
        %2548 = vst [vmem:[%s339 + $0x390] sm:$0xff] %v2420
        %2549 = vst [vmem:[%s339 + $0x398] sm:$0xff] %v2421
        %2550 = vst [vmem:[%s339 + $0x3a0] sm:$0xff] %v2422
        %2551 = vst [vmem:[%s339 + $0x3a8] sm:$0xff] %v2423
        %2552 = vst [vmem:[%s339 + $0x3b0] sm:$0xff] %v2424
        %2553 = vst [vmem:[%s339 + $0x3b8] sm:$0xff] %v2425
        %2554 = vst [vmem:[%s339 + $0x3c0] sm:$0xff] %v2426
        %2555 = vst [vmem:[%s339 + $0x3c8] sm:$0xff] %v2427
        %2556 = vst [vmem:[%s339 + $0x3d0] sm:$0xff] %v2428
        %2557 = vst [vmem:[%s339 + $0x3d8] sm:$0xff] %v2429
        %2558 = vst [vmem:[%s339 + $0x3e0] sm:$0xff] %v2430
        %2559 = vst [vmem:[%s339 + $0x3e8] sm:$0xff] %v2431
        %2560 = vst [vmem:[%s339 + $0x3f0] sm:$0xff] %v2432
        %2561 = vst [vmem:[%s339 + $0x3f8] sm:$0xff] %v2433
        %s2562 = sand.u32 %s192, 1
        %s2563 = sand.u32 %s192, 1
        %s2564 = smul.addr %s2563, 1024
        %s2565 = scalar_lea.vmem [#allocation6], %s2564
        // Predicated region
        $region57: #{_lambda_.1} parent=47 // pred_check
          %p2566 = pneg %p202
        $region58: #{_lambda_.1} parent=47 // pred_check_branch
          %2568 = sbr.rel (%p2566) target = $region60
        $region59: #{_lambda_.1} parent=47 // pred_region
          %s2569 = smul.u32 8, %s22
          %s2570 = smul.addr %s2569, 8
          %s2571 = scalar_lea.vmem %s7, %s2570
          // Predicated region
          $region61: #{_lambda_.1} parent=59 // pred_check
            _
          $region62: #{_lambda_.1} parent=59 // pred_check_branch
            %2573 = sbr.rel (0) target = $region64
          $region63: #{_lambda_.1} parent=59 // pred_region
            // Predicated region
            $region65: #{_lambda_.1} parent=63 // pred_check
              _
            $region66: #{_lambda_.1} parent=63 // pred_check_branch
              %2575 = sbr.rel (0) target = $region68
            $region67: #{_lambda_.1} parent=63 // pred_region
              loop: start=0, step=1, limit=1
              $region69: #{_lambda_.1} parent=67 // loop_pre_header
                _
              $region70: #{_lambda_.1} parent=67 // loop_header
                %s2577 = sphi 0, %s2581
                %p2578 = scmp.ge.s32.totalorder %s2577, 1
                %s2582 = sphi %s2565, %s2565
                %s2583 = sphi %s2571, %s2571
              $region71: #{_lambda_.1} parent=67 // loop_header_branch
                %2580 = sbr.rel (%p2578) target = $region75
              $region72: #{_lambda_.1} parent=67 // loop_body
                %v2584 = vld [vmem:[%s2582] sm:$0xff]
                %2585 = vst [vmem:[%s2583] sm:$0xff] %v2584
                %v2586 = vld [vmem:[%s2582 + $0x8] sm:$0xff]
                %2587 = vst [vmem:[%s2583 + $0x8] sm:$0xff] %v2586
                %v2588 = vld [vmem:[%s2582 + $0x10] sm:$0xff]
                %2589 = vst [vmem:[%s2583 + $0x10] sm:$0xff] %v2588
                %v2590 = vld [vmem:[%s2582 + $0x18] sm:$0xff]
                %2591 = vst [vmem:[%s2583 + $0x18] sm:$0xff] %v2590
                %v2592 = vld [vmem:[%s2582 + $0x20] sm:$0xff]
                %2593 = vst [vmem:[%s2583 + $0x20] sm:$0xff] %v2592
                %v2594 = vld [vmem:[%s2582 + $0x28] sm:$0xff]
                %2595 = vst [vmem:[%s2583 + $0x28] sm:$0xff] %v2594
                %v2596 = vld [vmem:[%s2582 + $0x30] sm:$0xff]
                %2597 = vst [vmem:[%s2583 + $0x30] sm:$0xff] %v2596
                %v2598 = vld [vmem:[%s2582 + $0x38] sm:$0xff]
                %2599 = vst [vmem:[%s2583 + $0x38] sm:$0xff] %v2598
                %v2600 = vld [vmem:[%s2582 + $0x40] sm:$0xff]
                %2601 = vst [vmem:[%s2583 + $0x80] sm:$0xff] %v2600
                %v2602 = vld [vmem:[%s2582 + $0x48] sm:$0xff]
                %2603 = vst [vmem:[%s2583 + $0x88] sm:$0xff] %v2602
                %v2604 = vld [vmem:[%s2582 + $0x50] sm:$0xff]
                %2605 = vst [vmem:[%s2583 + $0x90] sm:$0xff] %v2604
                %v2606 = vld [vmem:[%s2582 + $0x58] sm:$0xff]
                %2607 = vst [vmem:[%s2583 + $0x98] sm:$0xff] %v2606
                %v2608 = vld [vmem:[%s2582 + $0x60] sm:$0xff]
                %2609 = vst [vmem:[%s2583 + $0xa0] sm:$0xff] %v2608
                %v2610 = vld [vmem:[%s2582 + $0x68] sm:$0xff]
                %2611 = vst [vmem:[%s2583 + $0xa8] sm:$0xff] %v2610
                %v2612 = vld [vmem:[%s2582 + $0x70] sm:$0xff]
                %2613 = vst [vmem:[%s2583 + $0xb0] sm:$0xff] %v2612
                %v2614 = vld [vmem:[%s2582 + $0x78] sm:$0xff]
                %2615 = vst [vmem:[%s2583 + $0xb8] sm:$0xff] %v2614
                %v2616 = vld [vmem:[%s2582 + $0x80] sm:$0xff]
                %2617 = vst [vmem:[%s2583 + $0x100] sm:$0xff] %v2616
                %v2618 = vld [vmem:[%s2582 + $0x88] sm:$0xff]
                %2619 = vst [vmem:[%s2583 + $0x108] sm:$0xff] %v2618
                %v2620 = vld [vmem:[%s2582 + $0x90] sm:$0xff]
                %2621 = vst [vmem:[%s2583 + $0x110] sm:$0xff] %v2620
                %v2622 = vld [vmem:[%s2582 + $0x98] sm:$0xff]
                %2623 = vst [vmem:[%s2583 + $0x118] sm:$0xff] %v2622
                %v2624 = vld [vmem:[%s2582 + $0xa0] sm:$0xff]
                %2625 = vst [vmem:[%s2583 + $0x120] sm:$0xff] %v2624
                %v2626 = vld [vmem:[%s2582 + $0xa8] sm:$0xff]
                %2627 = vst [vmem:[%s2583 + $0x128] sm:$0xff] %v2626
                %v2628 = vld [vmem:[%s2582 + $0xb0] sm:$0xff]
                %2629 = vst [vmem:[%s2583 + $0x130] sm:$0xff] %v2628
                %v2630 = vld [vmem:[%s2582 + $0xb8] sm:$0xff]
                %2631 = vst [vmem:[%s2583 + $0x138] sm:$0xff] %v2630
                %v2632 = vld [vmem:[%s2582 + $0xc0] sm:$0xff]
                %2633 = vst [vmem:[%s2583 + $0x180] sm:$0xff] %v2632
                %v2634 = vld [vmem:[%s2582 + $0xc8] sm:$0xff]
                %2635 = vst [vmem:[%s2583 + $0x188] sm:$0xff] %v2634
                %v2636 = vld [vmem:[%s2582 + $0xd0] sm:$0xff]
                %2637 = vst [vmem:[%s2583 + $0x190] sm:$0xff] %v2636
                %v2638 = vld [vmem:[%s2582 + $0xd8] sm:$0xff]
                %2639 = vst [vmem:[%s2583 + $0x198] sm:$0xff] %v2638
                %v2640 = vld [vmem:[%s2582 + $0xe0] sm:$0xff]
                %2641 = vst [vmem:[%s2583 + $0x1a0] sm:$0xff] %v2640
                %v2642 = vld [vmem:[%s2582 + $0xe8] sm:$0xff]
                %2643 = vst [vmem:[%s2583 + $0x1a8] sm:$0xff] %v2642
                %v2644 = vld [vmem:[%s2582 + $0xf0] sm:$0xff]
                %2645 = vst [vmem:[%s2583 + $0x1b0] sm:$0xff] %v2644
                %v2646 = vld [vmem:[%s2582 + $0xf8] sm:$0xff]
                %2647 = vst [vmem:[%s2583 + $0x1b8] sm:$0xff] %v2646
                %v2648 = vld [vmem:[%s2582 + $0x100] sm:$0xff]
                %2649 = vst [vmem:[%s2583 + $0x200] sm:$0xff] %v2648
                %v2650 = vld [vmem:[%s2582 + $0x108] sm:$0xff]
                %2651 = vst [vmem:[%s2583 + $0x208] sm:$0xff] %v2650
                %v2652 = vld [vmem:[%s2582 + $0x110] sm:$0xff]
                %2653 = vst [vmem:[%s2583 + $0x210] sm:$0xff] %v2652
                %v2654 = vld [vmem:[%s2582 + $0x118] sm:$0xff]
                %2655 = vst [vmem:[%s2583 + $0x218] sm:$0xff] %v2654
                %v2656 = vld [vmem:[%s2582 + $0x120] sm:$0xff]
                %2657 = vst [vmem:[%s2583 + $0x220] sm:$0xff] %v2656
                %v2658 = vld [vmem:[%s2582 + $0x128] sm:$0xff]
                %2659 = vst [vmem:[%s2583 + $0x228] sm:$0xff] %v2658
                %v2660 = vld [vmem:[%s2582 + $0x130] sm:$0xff]
                %2661 = vst [vmem:[%s2583 + $0x230] sm:$0xff] %v2660
                %v2662 = vld [vmem:[%s2582 + $0x138] sm:$0xff]
                %2663 = vst [vmem:[%s2583 + $0x238] sm:$0xff] %v2662
                %v2664 = vld [vmem:[%s2582 + $0x140] sm:$0xff]
                %2665 = vst [vmem:[%s2583 + $0x280] sm:$0xff] %v2664
                %v2666 = vld [vmem:[%s2582 + $0x148] sm:$0xff]
                %2667 = vst [vmem:[%s2583 + $0x288] sm:$0xff] %v2666
                %v2668 = vld [vmem:[%s2582 + $0x150] sm:$0xff]
                %2669 = vst [vmem:[%s2583 + $0x290] sm:$0xff] %v2668
                %v2670 = vld [vmem:[%s2582 + $0x158] sm:$0xff]
                %2671 = vst [vmem:[%s2583 + $0x298] sm:$0xff] %v2670
                %v2672 = vld [vmem:[%s2582 + $0x160] sm:$0xff]
                %2673 = vst [vmem:[%s2583 + $0x2a0] sm:$0xff] %v2672
                %v2674 = vld [vmem:[%s2582 + $0x168] sm:$0xff]
                %2675 = vst [vmem:[%s2583 + $0x2a8] sm:$0xff] %v2674
                %v2676 = vld [vmem:[%s2582 + $0x170] sm:$0xff]
                %2677 = vst [vmem:[%s2583 + $0x2b0] sm:$0xff] %v2676
                %v2678 = vld [vmem:[%s2582 + $0x178] sm:$0xff]
                %2679 = vst [vmem:[%s2583 + $0x2b8] sm:$0xff] %v2678
                %v2680 = vld [vmem:[%s2582 + $0x180] sm:$0xff]
                %2681 = vst [vmem:[%s2583 + $0x300] sm:$0xff] %v2680
                %v2682 = vld [vmem:[%s2582 + $0x188] sm:$0xff]
                %2683 = vst [vmem:[%s2583 + $0x308] sm:$0xff] %v2682
                %v2684 = vld [vmem:[%s2582 + $0x190] sm:$0xff]
                %2685 = vst [vmem:[%s2583 + $0x310] sm:$0xff] %v2684
                %v2686 = vld [vmem:[%s2582 + $0x198] sm:$0xff]
                %2687 = vst [vmem:[%s2583 + $0x318] sm:$0xff] %v2686
                %v2688 = vld [vmem:[%s2582 + $0x1a0] sm:$0xff]
                %2689 = vst [vmem:[%s2583 + $0x320] sm:$0xff] %v2688
                %v2690 = vld [vmem:[%s2582 + $0x1a8] sm:$0xff]
                %2691 = vst [vmem:[%s2583 + $0x328] sm:$0xff] %v2690
                %v2692 = vld [vmem:[%s2582 + $0x1b0] sm:$0xff]
                %2693 = vst [vmem:[%s2583 + $0x330] sm:$0xff] %v2692
                %v2694 = vld [vmem:[%s2582 + $0x1b8] sm:$0xff]
                %2695 = vst [vmem:[%s2583 + $0x338] sm:$0xff] %v2694
                %v2696 = vld [vmem:[%s2582 + $0x1c0] sm:$0xff]
                %2697 = vst [vmem:[%s2583 + $0x380] sm:$0xff] %v2696
                %v2698 = vld [vmem:[%s2582 + $0x1c8] sm:$0xff]
                %2699 = vst [vmem:[%s2583 + $0x388] sm:$0xff] %v2698
                %v2700 = vld [vmem:[%s2582 + $0x1d0] sm:$0xff]
                %2701 = vst [vmem:[%s2583 + $0x390] sm:$0xff] %v2700
                %v2702 = vld [vmem:[%s2582 + $0x1d8] sm:$0xff]
                %2703 = vst [vmem:[%s2583 + $0x398] sm:$0xff] %v2702
                %v2704 = vld [vmem:[%s2582 + $0x1e0] sm:$0xff]
                %2705 = vst [vmem:[%s2583 + $0x3a0] sm:$0xff] %v2704
                %v2706 = vld [vmem:[%s2582 + $0x1e8] sm:$0xff]
                %2707 = vst [vmem:[%s2583 + $0x3a8] sm:$0xff] %v2706
                %v2708 = vld [vmem:[%s2582 + $0x1f0] sm:$0xff]
                %2709 = vst [vmem:[%s2583 + $0x3b0] sm:$0xff] %v2708
                %v2710 = vld [vmem:[%s2582 + $0x1f8] sm:$0xff]
                %2711 = vst [vmem:[%s2583 + $0x3b8] sm:$0xff] %v2710
                %v2712 = vld [vmem:[%s2582 + $0x200] sm:$0xff]
                %2713 = vst [vmem:[%s2583 + $0x400] sm:$0xff] %v2712
                %v2714 = vld [vmem:[%s2582 + $0x208] sm:$0xff]
                %2715 = vst [vmem:[%s2583 + $0x408] sm:$0xff] %v2714
                %v2716 = vld [vmem:[%s2582 + $0x210] sm:$0xff]
                %2717 = vst [vmem:[%s2583 + $0x410] sm:$0xff] %v2716
                %v2718 = vld [vmem:[%s2582 + $0x218] sm:$0xff]
                %2719 = vst [vmem:[%s2583 + $0x418] sm:$0xff] %v2718
                %v2720 = vld [vmem:[%s2582 + $0x220] sm:$0xff]
                %2721 = vst [vmem:[%s2583 + $0x420] sm:$0xff] %v2720
                %v2722 = vld [vmem:[%s2582 + $0x228] sm:$0xff]
                %2723 = vst [vmem:[%s2583 + $0x428] sm:$0xff] %v2722
                %v2724 = vld [vmem:[%s2582 + $0x230] sm:$0xff]
                %2725 = vst [vmem:[%s2583 + $0x430] sm:$0xff] %v2724
                %v2726 = vld [vmem:[%s2582 + $0x238] sm:$0xff]
                %2727 = vst [vmem:[%s2583 + $0x438] sm:$0xff] %v2726
                %v2728 = vld [vmem:[%s2582 + $0x240] sm:$0xff]
                %2729 = vst [vmem:[%s2583 + $0x480] sm:$0xff] %v2728
                %v2730 = vld [vmem:[%s2582 + $0x248] sm:$0xff]
                %2731 = vst [vmem:[%s2583 + $0x488] sm:$0xff] %v2730
                %v2732 = vld [vmem:[%s2582 + $0x250] sm:$0xff]
                %2733 = vst [vmem:[%s2583 + $0x490] sm:$0xff] %v2732
                %v2734 = vld [vmem:[%s2582 + $0x258] sm:$0xff]
                %2735 = vst [vmem:[%s2583 + $0x498] sm:$0xff] %v2734
                %v2736 = vld [vmem:[%s2582 + $0x260] sm:$0xff]
                %2737 = vst [vmem:[%s2583 + $0x4a0] sm:$0xff] %v2736
                %v2738 = vld [vmem:[%s2582 + $0x268] sm:$0xff]
                %2739 = vst [vmem:[%s2583 + $0x4a8] sm:$0xff] %v2738
                %v2740 = vld [vmem:[%s2582 + $0x270] sm:$0xff]
                %2741 = vst [vmem:[%s2583 + $0x4b0] sm:$0xff] %v2740
                %v2742 = vld [vmem:[%s2582 + $0x278] sm:$0xff]
                %2743 = vst [vmem:[%s2583 + $0x4b8] sm:$0xff] %v2742
                %v2744 = vld [vmem:[%s2582 + $0x280] sm:$0xff]
                %2745 = vst [vmem:[%s2583 + $0x500] sm:$0xff] %v2744
                %v2746 = vld [vmem:[%s2582 + $0x288] sm:$0xff]
                %2747 = vst [vmem:[%s2583 + $0x508] sm:$0xff] %v2746
                %v2748 = vld [vmem:[%s2582 + $0x290] sm:$0xff]
                %2749 = vst [vmem:[%s2583 + $0x510] sm:$0xff] %v2748
                %v2750 = vld [vmem:[%s2582 + $0x298] sm:$0xff]
                %2751 = vst [vmem:[%s2583 + $0x518] sm:$0xff] %v2750
                %v2752 = vld [vmem:[%s2582 + $0x2a0] sm:$0xff]
                %2753 = vst [vmem:[%s2583 + $0x520] sm:$0xff] %v2752
                %v2754 = vld [vmem:[%s2582 + $0x2a8] sm:$0xff]
                %2755 = vst [vmem:[%s2583 + $0x528] sm:$0xff] %v2754
                %v2756 = vld [vmem:[%s2582 + $0x2b0] sm:$0xff]
                %2757 = vst [vmem:[%s2583 + $0x530] sm:$0xff] %v2756
                %v2758 = vld [vmem:[%s2582 + $0x2b8] sm:$0xff]
                %2759 = vst [vmem:[%s2583 + $0x538] sm:$0xff] %v2758
                %v2760 = vld [vmem:[%s2582 + $0x2c0] sm:$0xff]
                %2761 = vst [vmem:[%s2583 + $0x580] sm:$0xff] %v2760
                %v2762 = vld [vmem:[%s2582 + $0x2c8] sm:$0xff]
                %2763 = vst [vmem:[%s2583 + $0x588] sm:$0xff] %v2762
                %v2764 = vld [vmem:[%s2582 + $0x2d0] sm:$0xff]
                %2765 = vst [vmem:[%s2583 + $0x590] sm:$0xff] %v2764
                %v2766 = vld [vmem:[%s2582 + $0x2d8] sm:$0xff]
                %2767 = vst [vmem:[%s2583 + $0x598] sm:$0xff] %v2766
                %v2768 = vld [vmem:[%s2582 + $0x2e0] sm:$0xff]
                %2769 = vst [vmem:[%s2583 + $0x5a0] sm:$0xff] %v2768
                %v2770 = vld [vmem:[%s2582 + $0x2e8] sm:$0xff]
                %2771 = vst [vmem:[%s2583 + $0x5a8] sm:$0xff] %v2770
                %v2772 = vld [vmem:[%s2582 + $0x2f0] sm:$0xff]
                %2773 = vst [vmem:[%s2583 + $0x5b0] sm:$0xff] %v2772
                %v2774 = vld [vmem:[%s2582 + $0x2f8] sm:$0xff]
                %2775 = vst [vmem:[%s2583 + $0x5b8] sm:$0xff] %v2774
                %v2776 = vld [vmem:[%s2582 + $0x300] sm:$0xff]
                %2777 = vst [vmem:[%s2583 + $0x600] sm:$0xff] %v2776
                %v2778 = vld [vmem:[%s2582 + $0x308] sm:$0xff]
                %2779 = vst [vmem:[%s2583 + $0x608] sm:$0xff] %v2778
                %v2780 = vld [vmem:[%s2582 + $0x310] sm:$0xff]
                %2781 = vst [vmem:[%s2583 + $0x610] sm:$0xff] %v2780
                %v2782 = vld [vmem:[%s2582 + $0x318] sm:$0xff]
                %2783 = vst [vmem:[%s2583 + $0x618] sm:$0xff] %v2782
                %v2784 = vld [vmem:[%s2582 + $0x320] sm:$0xff]
                %2785 = vst [vmem:[%s2583 + $0x620] sm:$0xff] %v2784
                %v2786 = vld [vmem:[%s2582 + $0x328] sm:$0xff]
                %2787 = vst [vmem:[%s2583 + $0x628] sm:$0xff] %v2786
                %v2788 = vld [vmem:[%s2582 + $0x330] sm:$0xff]
                %2789 = vst [vmem:[%s2583 + $0x630] sm:$0xff] %v2788
                %v2790 = vld [vmem:[%s2582 + $0x338] sm:$0xff]
                %2791 = vst [vmem:[%s2583 + $0x638] sm:$0xff] %v2790
                %v2792 = vld [vmem:[%s2582 + $0x340] sm:$0xff]
                %2793 = vst [vmem:[%s2583 + $0x680] sm:$0xff] %v2792
                %v2794 = vld [vmem:[%s2582 + $0x348] sm:$0xff]
                %2795 = vst [vmem:[%s2583 + $0x688] sm:$0xff] %v2794
                %v2796 = vld [vmem:[%s2582 + $0x350] sm:$0xff]
                %2797 = vst [vmem:[%s2583 + $0x690] sm:$0xff] %v2796
                %v2798 = vld [vmem:[%s2582 + $0x358] sm:$0xff]
                %2799 = vst [vmem:[%s2583 + $0x698] sm:$0xff] %v2798
                %v2800 = vld [vmem:[%s2582 + $0x360] sm:$0xff]
                %2801 = vst [vmem:[%s2583 + $0x6a0] sm:$0xff] %v2800
                %v2802 = vld [vmem:[%s2582 + $0x368] sm:$0xff]
                %2803 = vst [vmem:[%s2583 + $0x6a8] sm:$0xff] %v2802
                %v2804 = vld [vmem:[%s2582 + $0x370] sm:$0xff]
                %2805 = vst [vmem:[%s2583 + $0x6b0] sm:$0xff] %v2804
                %v2806 = vld [vmem:[%s2582 + $0x378] sm:$0xff]
                %2807 = vst [vmem:[%s2583 + $0x6b8] sm:$0xff] %v2806
                %v2808 = vld [vmem:[%s2582 + $0x380] sm:$0xff]
                %2809 = vst [vmem:[%s2583 + $0x700] sm:$0xff] %v2808
                %v2810 = vld [vmem:[%s2582 + $0x388] sm:$0xff]
                %2811 = vst [vmem:[%s2583 + $0x708] sm:$0xff] %v2810
                %v2812 = vld [vmem:[%s2582 + $0x390] sm:$0xff]
                %2813 = vst [vmem:[%s2583 + $0x710] sm:$0xff] %v2812
                %v2814 = vld [vmem:[%s2582 + $0x398] sm:$0xff]
                %2815 = vst [vmem:[%s2583 + $0x718] sm:$0xff] %v2814
                %v2816 = vld [vmem:[%s2582 + $0x3a0] sm:$0xff]
                %2817 = vst [vmem:[%s2583 + $0x720] sm:$0xff] %v2816
                %v2818 = vld [vmem:[%s2582 + $0x3a8] sm:$0xff]
                %2819 = vst [vmem:[%s2583 + $0x728] sm:$0xff] %v2818
                %v2820 = vld [vmem:[%s2582 + $0x3b0] sm:$0xff]
                %2821 = vst [vmem:[%s2583 + $0x730] sm:$0xff] %v2820
                %v2822 = vld [vmem:[%s2582 + $0x3b8] sm:$0xff]
                %2823 = vst [vmem:[%s2583 + $0x738] sm:$0xff] %v2822
                %v2824 = vld [vmem:[%s2582 + $0x3c0] sm:$0xff]
                %2825 = vst [vmem:[%s2583 + $0x780] sm:$0xff] %v2824
                %v2826 = vld [vmem:[%s2582 + $0x3c8] sm:$0xff]
                %2827 = vst [vmem:[%s2583 + $0x788] sm:$0xff] %v2826
                %v2828 = vld [vmem:[%s2582 + $0x3d0] sm:$0xff]
                %2829 = vst [vmem:[%s2583 + $0x790] sm:$0xff] %v2828
                %v2830 = vld [vmem:[%s2582 + $0x3d8] sm:$0xff]
                %2831 = vst [vmem:[%s2583 + $0x798] sm:$0xff] %v2830
                %v2832 = vld [vmem:[%s2582 + $0x3e0] sm:$0xff]
                %2833 = vst [vmem:[%s2583 + $0x7a0] sm:$0xff] %v2832
                %v2834 = vld [vmem:[%s2582 + $0x3e8] sm:$0xff]
                %2835 = vst [vmem:[%s2583 + $0x7a8] sm:$0xff] %v2834
                %v2836 = vld [vmem:[%s2582 + $0x3f0] sm:$0xff]
                %2837 = vst [vmem:[%s2583 + $0x7b0] sm:$0xff] %v2836
                %v2838 = vld [vmem:[%s2582 + $0x3f8] sm:$0xff]
                %2839 = vst [vmem:[%s2583 + $0x7b8] sm:$0xff] %v2838
              $region73: #{_lambda_.1} parent=67 // loop_footer
                %s2581 = sadd.s32 1, %s2577
              $region74: #{_lambda_.1} parent=67 // loop_footer_branch
                %2576 = sbr.rel target = $region70
              $region75: #{_lambda_.1} parent=67 // loop_exit
                _
            $region68: #{_lambda_.1} parent=63 // pred_fallthru
              _
            // Predicated region
            $region76: #{_lambda_.1} parent=63 // pred_check
              _
            $region77: #{_lambda_.1} parent=63 // pred_check_branch
              %2841 = sbr.rel target = $region79
            $region78: #{_lambda_.1} parent=63 // pred_region
              _
            $region79: #{_lambda_.1} parent=63 // pred_fallthru
              _
          $region64: #{_lambda_.1} parent=59 // pred_fallthru
            _
          %2842 = vnop
        $region60: #{_lambda_.1} parent=47 // pred_fallthru
          _
      $region48: #{_lambda_.1} parent=5 // pred_fallthru
        _
      %p2843 = scmp.le.s32.totalorder 2, %s17
      // Predicated region
      $region80: #{_lambda_.1} parent=5 // pred_check
        %p2844 = pneg %p2843
      $region81: #{_lambda_.1} parent=5 // pred_check_branch
        %2846 = sbr.rel (%p2844) target = $region83
      $region82: #{_lambda_.1} parent=5 // pred_region
        %s2847 = ssub.s32 %s17, 2
        // Predicated region
        $region84: #{_lambda_.1} parent=82 // pred_check
          %p2848 = pneg %p208
        $region85: #{_lambda_.1} parent=82 // pred_check_branch
          %2850 = sbr.rel (%p2848) target = $region87
        $region86: #{_lambda_.1} parent=82 // pred_region
          %s2851 = sand.u32 %s193, 1
          %s2852 = sand.u32 %s193, 1
          %s2853 = smul.addr %s2852, 1024
          %s2854 = scalar_lea.vmem [#allocation6], %s2853
        $region87: #{_lambda_.1} parent=82 // pred_fallthru
          _
      $region83: #{_lambda_.1} parent=5 // pred_fallthru
        _
    $region6: #{_lambda_.1} parent=1 // loop_footer
      %s21 = sadd.s32 1, %s17
    $region7: #{_lambda_.1} parent=1 // loop_footer_branch
      %16 = sbr.rel target = $region3
    $region8: #{_lambda_.1} parent=1 // loop_exit
      _
    %2855 = vsyncpa [#allocation3], 1
    %s2856 = scalar_lea.sflag [#allocation3], 1
    %2857 = vsyncpa %s2856, 1
    %2858 = vsyncpa [#allocation5], 1
    %s2859 = scalar_lea.sflag [#allocation5], 1
    %2860 = vsyncpa %s2859, 1

</llo_original>
